<compile_context>
chip_gen: v7x
topology: tpu7x:2x2x1
jax: 0.10.0
libtpu: 0.0.40
codegen_flags: <defaults>
</compile_context>

<pallas_src>
import math
from functools import partial

import jax
import jax.numpy as jnp
import numpy as np
from jax.experimental import pallas as pl
from jax.experimental.pallas import tpu as pltpu


def _round_up(n, m):
    return ((n + m - 1) // m) * m


def _pad_axis(x, axis, target):
    """Zero-pad `x` along `axis` up to static size `target`."""
    pad = target - x.shape[axis]
    if pad <= 0:
        return x
    shape = list(x.shape)
    shape[axis] = pad
    return jnp.concatenate([x, jnp.zeros(shape, x.dtype)], axis=axis)


# ----------------------------------------------------------------------------
# Pallas kernel: attention + pointer scores + context + 1-step LSTM + fused heads
# ----------------------------------------------------------------------------
def ptr_decoder_kernel(we_ref, enc_ref, h0_ref, c0_ref,
                       w1e_ref, w1b_ref, v_ref,
                       hfused_ref, wih_ref, blstm_ref,
                       headw_ref, headb_ref,
                       pptr_ref, pvg_ref, hout_ref, cout_ref):
    f32 = jnp.float32
    bf16 = jnp.bfloat16
    SB, H = enc_ref.shape          # enc is the time-major flat (S*B, H) slab
    B = h0_ref.shape[0]
    S = SB // B
    SP = pptr_ref.shape[1]

    h0 = h0_ref[...]               # (B, H)  f32 decoder state  == last_hidden[0][-1]
    c0 = c0_ref[...]               # (B, H)  f32 cell state
    h0_bf = h0.astype(bf16)

    # ---- fused decoder-state projection: one (H, 5H) matmul = [W1_h | Whh] -----
    h_proj = jnp.dot(h0_bf, hfused_ref[...], preferred_element_type=f32)   # (B, 5H)
    h_part = h_proj[:, :H]          # W1 contribution   (B, H)   (H-aligned slice)
    h_gates = h_proj[:, H:]         # Whh contribution  (B, 4H)

    # ---- energy = tanh(W1([h_repeated ; encoder_outputs])) ---------------------
    enc_bf = enc_ref[...]                                                   # (S*B, H) bf16
    e_part = jnp.dot(enc_bf, w1e_ref[...], preferred_element_type=f32)      # (S*B, H) f32
    # f32 reshape with B % 8 == 0 is layout-preserving (no relayout copy).
    energy = jnp.tanh(e_part.reshape(S, B, H)
                      + h_part[None, :, :] + w1b_ref[...][None])            # (S, B, H)

    # ---- p_ptr energies: scores[s, b] = v . energy[s, b, :] --------------------
    scores_sb = jnp.sum(energy * v_ref[...][None], axis=-1)                 # (S, B) f32

    # ---- legacy F.softmax(p_ptr) (implicit dim=0) -> softmax over the BATCH ----
    m = jnp.max(scores_sb, axis=1, keepdims=True)
    ex = jnp.exp(scores_sb - m)
    denom = jnp.sum(ex, axis=1, keepdims=True)
    attn = ex * pl.reciprocal(denom, approx=True)                           # (S, B)

    # ---- context = a.bmm(encoder_outputs): reduce over the time axis -----------
    enc_f32 = enc_bf.astype(f32).reshape(S, B, H)
    context = jnp.sum(attn[:, :, None] * enc_f32, axis=0)                   # (B, H) f32

    # ---- one LSTM step on [word_embedded ; context], single fused ih matmul ----
    x = jnp.concatenate([we_ref[...], context.astype(bf16)], axis=-1)       # (B, 2H) bf16
    gates = (jnp.dot(x, wih_ref[...], preferred_element_type=f32)
             + h_gates + blstm_ref[...])                                    # (B, 4H) f32
    i_g = jax.nn.sigmoid(gates[:, 0 * H:1 * H])
    f_g = jax.nn.sigmoid(gates[:, 1 * H:2 * H])
    g_g = jnp.tanh(gates[:, 2 * H:3 * H])
    o_g = jax.nn.sigmoid(gates[:, 3 * H:4 * H])
    c_new = f_g * c0 + i_g * g_g
    h_new = o_g * jnp.tanh(c_new)

    # ---- fused vocab + gate head: one (H, Vp) matmul, lane-dense slab ----------
    pvg = (jnp.dot(h_new.astype(bf16), headw_ref[...], preferred_element_type=f32)
           + headb_ref[...])                                                # (B, Vp)

    # ---- lane-dense (B, multiple-of-128) pointer-energy output -----------------
    # Pad the batch axis with a tiny MXU selector matmul, pad the time axis on the
    # sublane side, then do a tile-aligned square transpose and slice the B rows.
    BP = _round_up(B, 128)
    row = jax.lax.broadcasted_iota(jnp.int32, (B, BP), 0)
    col = jax.lax.broadcasted_iota(jnp.int32, (B, BP), 1)
    sel = (row == col).astype(f32)                                          # (B, BP) identity
    scp = jnp.dot(scores_sb, sel, preferred_element_type=f32)               # (S, BP)
    scp = _pad_axis(scp, 0, SP)                                             # (SP, BP)
    pptr_ref[...] = jnp.transpose(scp)[:B, :]                               # (B, SP) unmasked vst
    pvg_ref[...] = pvg
    hout_ref[...] = h_new
    cout_ref[...] = c_new


# ----------------------------------------------------------------------------
# One-time parameter packing: fused, lane-padded, bf16 kernel weights
# ----------------------------------------------------------------------------
def pack_params(params):
    bf16 = jnp.bfloat16
    H = params['Whh'].shape[0]
    V = params['U_w'].shape[1]
    Vp = _round_up(V + 1, 128)                 # vocab logits + gate column, lane-padded
    head_w = jnp.concatenate(
        [params['U_w'], params['W_w'], jnp.zeros((H, Vp - V - 1), jnp.float32)], axis=1)
    head_b = jnp.concatenate(
        [params['U_b'], params['W_b'], jnp.zeros((1, Vp - V - 1), jnp.float32)], axis=1)
    return {
        'emb': params['embedding'].astype(bf16),                             # (V, H)
        'w1_e': params['W1_w'][H:, :].astype(bf16),                          # (H, H)
        'w1_b': params['W1_b'],                                              # (1, H)  f32
        'v': params['v'],                                                    # (1, H)  f32
        # fused decoder-state projection [W1_h | Whh] -> one (H, 5H) matmul
        'h_fused': jnp.concatenate([params['W1_w'][:H, :], params['Whh']], axis=1).astype(bf16),
        'wih': params['Wih'].astype(bf16),                                   # (2H, 4H)
        'b_lstm': params['b_lstm'],                                          # (1, 4H) f32
        # fused output head [U | W | 0-pad] -> one (H, Vp) matmul
        'head_w': head_w.astype(bf16),                                       # (H, Vp)
        'head_b': head_b,                                                    # (1, Vp) f32
    }


# ----------------------------------------------------------------------------
# Wrapper (embedding gather, pallas_call plumbing, tiny epilogue slices)
# ----------------------------------------------------------------------------
@partial(jax.jit, static_argnames=("vocab_size",))
def ptr_decoder_forward(kparams, input_seq, last_hidden, encoder_outputs, *, vocab_size):
    f32 = jnp.float32
    h_all, c_all = last_hidden
    h0 = h_all[-1].astype(f32)                       # (B, H)
    c0 = c_all[-1].astype(f32)                       # (B, H)
    S, B, H = encoder_outputs.shape
    V = vocab_size

    # Keep the encoder time-major: no (S,B,H)->(B,S,H) transpose (extra HBM pass).
    # Contiguous reshape to a flat (S*B, H) slab; bf16 halves the HBM read.
    enc_flat = encoder_outputs.astype(jnp.bfloat16).reshape(S * B, H)
    we = kparams['emb'][input_seq]                   # (B, H) bf16; dropout = identity (eval)

    Vp = kparams['head_w'].shape[1]
    SP = _round_up(S, 128)

    args = (we, enc_flat, h0, c0,
            kparams['w1_e'], kparams['w1_b'], kparams['v'],
            kparams['h_fused'], kparams['wih'], kparams['b_lstm'],
            kparams['head_w'], kparams['head_b'])
    out_shape = (
        jax.ShapeDtypeStruct((B, SP), f32),          # pointer energies, lane-padded
        jax.ShapeDtypeStruct((B, Vp), f32),          # [vocab logits | gate logit | pad]
        jax.ShapeDtypeStruct((B, H), f32),           # new h
        jax.ShapeDtypeStruct((B, H), f32),           # new c
    )
    flops = 2 * (S * B * H * H + B * H * 5 * H + B * 2 * H * 4 * H + B * H * Vp)
    transcendentals = S * B * H + S * B + S + B * 4 * H + B * H
    bytes_accessed = (sum(int(a.size) * np.dtype(a.dtype).itemsize for a in args)
                      + sum(int(np.prod(o.shape)) * np.dtype(o.dtype).itemsize
                            for o in out_shape))

    # TODO(synk): for multi-step decoding, lift the time loop into the kernel
    # (grid axis, "arbitrary") so W1/Wih/Whh/U stay resident in VMEM across steps.
    # TODO(synk): at production vocab sizes, tile the fused head over a "parallel"
    # grid axis (BlockSpec (H, tV)) so U fits v7x's 64 MiB VMEM with double buffering.
    vmem = pl.BlockSpec(memory_space=pltpu.MemorySpace.VMEM)
    scores_pad, pvg, h_new, c_new = pl.pallas_call(
        ptr_decoder_kernel,
        out_shape=out_shape,
        in_specs=[vmem] * len(args),
        out_specs=(vmem,) * 4,
        # carry the recurrent state in place (h0 -> h_new, c0 -> c_new)
        input_output_aliases={2: 2, 3: 3},
        cost_estimate=pl.CostEstimate(flops=int(flops),
                                      transcendentals=int(transcendentals),
                                      bytes_accessed=int(bytes_accessed)),
    )(*args)

    p_ptr = scores_pad[:, None, :S]                  # (B, 1, S)  pre-softmax, as in PyTorch
    p_vacab = pvg[None, :, :V]                       # (1, B, V)  == U(output)
    gate = jax.nn.sigmoid(pvg[:, V:V + 1])           # (B, 1)     tiny epilogue on fused head
    hidden = (h_new[None], c_new[None])              # each (1, B, H)
    return p_ptr, p_vacab, gate, hidden


# ----------------------------------------------------------------------------
# Deterministic parameter init (shapes follow PtrDecoderRNN.__init__)
# ----------------------------------------------------------------------------
def init_params(key, hidden_size, output_size):
    H, V = hidden_size, output_size
    ks = jax.random.split(key, 12)

    def unif(k, shape, fan_in):
        b = 1.0 / math.sqrt(fan_in)
        return jax.random.uniform(k, shape, jnp.float32, -b, b)

    params = {}
    params['embedding'] = jax.random.normal(ks[0], (V, H), jnp.float32)      # nn.Embedding(V, H)
    # W1 = nn.Linear(2H, H) -- stored transposed for x @ W
    params['W1_w'] = unif(ks[1], (2 * H, H), 2 * H)
    params['W1_b'] = unif(ks[2], (1, H), 2 * H)
    # v ~ Normal(0, 1/sqrt(H))
    params['v'] = (1.0 / math.sqrt(H)) * jax.random.normal(ks[3], (1, H), jnp.float32)
    # nn.LSTM(2H, H, 1): weight_ih (4H,2H), weight_hh (4H,H), biases pre-summed; gates i,f,g,o.
    params['Wih'] = unif(ks[4], (2 * H, 4 * H), H)
    params['Whh'] = unif(ks[5], (H, 4 * H), H)
    params['b_lstm'] = unif(ks[6], (1, 4 * H), H) + unif(ks[7], (1, 4 * H), H)
    # U = nn.Linear(H, V), W = nn.Linear(H, 1) -- stored transposed
    params['U_w'] = unif(ks[8], (H, V), H)
    params['U_b'] = unif(ks[9], (1, V), H)
    params['W_w'] = unif(ks[10], (H, 1), H)
    params['W_b'] = unif(ks[11], (1, 1), H)
    # NOTE: self.concat = nn.Linear(2H, H) is unused in forward() -> not materialized.
    return params


# ----------------------------------------------------------------------------
# Pure-JAX reference: mirrors the PyTorch forward (incl. legacy softmax dim=0)
# using the same mixed precision as the kernel (bf16 matmul inputs, f32 accumulate).
# ----------------------------------------------------------------------------
def reference_forward(params, input_seq, last_hidden, encoder_outputs):
    f32, bf16 = jnp.float32, jnp.bfloat16
    h_all, c_all = last_hidden
    h0, c0 = h_all[-1], c_all[-1]
    H = h0.shape[-1]
    enc = jnp.transpose(encoder_outputs, (1, 0, 2))                 # (B, S, H)
    enc_bf = enc.astype(bf16)
    h0_bf = h0.astype(bf16)
    we_bf = params['embedding'].astype(bf16)[input_seq]             # (B, H)

    cat = jnp.concatenate(
        [jnp.broadcast_to(h0_bf[:, None, :], enc_bf.shape), enc_bf], axis=-1)
    energy = jnp.tanh(jnp.dot(cat, params['W1_w'].astype(bf16),
                              preferred_element_type=f32) + params['W1_b'])   # (B, S, H)
    scores = jnp.sum(energy * params['v'][0][None, None, :], axis=-1)          # (B, S)
    attn = jax.nn.softmax(scores, axis=0)            # legacy F.softmax(dim=None) -> batch axis
    context = jnp.sum(attn[:, :, None] * enc_bf.astype(f32), axis=1)           # (B, H)

    x_bf = jnp.concatenate([we_bf, context.astype(bf16)], axis=1)
    gates = (jnp.dot(x_bf, params['Wih'].astype(bf16), preferred_element_type=f32)
             + jnp.dot(h0_bf, params['Whh'].astype(bf16), preferred_element_type=f32)
             + params['b_lstm'])
    i = jax.nn.sigmoid(gates[:, :H])
    f = jax.nn.sigmoid(gates[:, H:2 * H])
    g = jnp.tanh(gates[:, 2 * H:3 * H])
    o = jax.nn.sigmoid(gates[:, 3 * H:])
    c_new = f * c0 + i * g
    h_new = o * jnp.tanh(c_new)

    hn_bf = h_new.astype(bf16)
    p_vocab = jnp.dot(hn_bf, params['U_w'].astype(bf16),
                      preferred_element_type=f32) + params['U_b']
    gate = jax.nn.sigmoid(jnp.dot(hn_bf, params['W_w'].astype(bf16),
                                  preferred_element_type=f32) + params['W_b'])
    return scores[:, None, :], p_vocab[None], gate, (h_new[None], c_new[None])


if __name__ == "__main__":
    # Lane-aligned demo sizes (feedback: H, 4H, V multiples of 128; B >= 8).
    B, S, H, V = 8, 16, 128, 256       # batch, max_len, hidden_size, output_size

    key = jax.random.PRNGKey(0)
    kp, k1, k2, k3, k4 = jax.random.split(key, 5)
    params = init_params(kp, H, V)
    kparams = pack_params(params)

    input_seq = jax.random.randint(k1, (B,), 0, V, dtype=jnp.int32)
    encoder_outputs = jax.random.normal(k2, (S, B, H), jnp.float32)
    last_hidden = (jax.random.normal(k3, (1, B, H), jnp.float32),
                   jax.random.normal(k4, (1, B, H), jnp.float32))

    p_ptr, p_vacab, gate, hidden = ptr_decoder_forward(
        kparams, input_seq, last_hidden, encoder_outputs, vocab_size=V)
    jax.block_until_ready((p_ptr, p_vacab, gate, hidden))

    # Correctness check against the pure-JAX mirror of the PyTorch forward.
    # Pointer energies are upstream of the approximate-reciprocal softmax -> tight;
    # downstream tensors get a looser bound covering approx-reciprocal / sum order.
    r_ptr, r_voc, r_gate, (r_h, r_c) = reference_forward(
        params, input_seq, last_hidden, encoder_outputs)
    np.testing.assert_allclose(np.asarray(p_ptr), np.asarray(r_ptr), rtol=1e-4, atol=1e-4)
    np.testing.assert_allclose(np.asarray(p_vacab), np.asarray(r_voc), rtol=2e-2, atol=2e-2)
    np.testing.assert_allclose(np.asarray(gate), np.asarray(r_gate), rtol=2e-2, atol=2e-2)
    np.testing.assert_allclose(np.asarray(hidden[0]), np.asarray(r_h), rtol=2e-2, atol=2e-2)
    np.testing.assert_allclose(np.asarray(hidden[1]), np.asarray(r_c), rtol=2e-2, atol=2e-2)

    assert p_ptr.shape == (B, 1, S) and p_vacab.shape == (1, B, V) and gate.shape == (B, 1)
    print("KERNEL_OK")
</pallas_src>

<mosaic_0001>
module attributes {stable_mosaic.version = 11 : i64} {
  func.func @ptr_decoder_kernel(%arg0: memref<8x128xbf16, #tpu.memory_space<vmem>>, %arg1: memref<128x128xbf16, #tpu.memory_space<vmem>>, %arg2: memref<8x128xf32, #tpu.memory_space<vmem>>, %arg3: memref<8x128xf32, #tpu.memory_space<vmem>>, %arg4: memref<128x128xbf16, #tpu.memory_space<vmem>>, %arg5: memref<1x128xf32, #tpu.memory_space<vmem>>, %arg6: memref<1x128xf32, #tpu.memory_space<vmem>>, %arg7: memref<128x640xbf16, #tpu.memory_space<vmem>>, %arg8: memref<256x512xbf16, #tpu.memory_space<vmem>>, %arg9: memref<1x512xf32, #tpu.memory_space<vmem>>, %arg10: memref<128x384xbf16, #tpu.memory_space<vmem>>, %arg11: memref<1x384xf32, #tpu.memory_space<vmem>>, %arg12: memref<8x128xf32, #tpu.memory_space<vmem>>, %arg13: memref<8x384xf32, #tpu.memory_space<vmem>>, %arg14: memref<8x128xf32, #tpu.memory_space<vmem>>, %arg15: memref<8x128xf32, #tpu.memory_space<vmem>>) attributes {dimension_semantics = [], scalar_prefetch = 0 : i64, scratch_operands = 0 : i64, tpu.core_type = #tpu.core_type<tc>} {
    %c0 = arith.constant 0 : index
    %c0_0 = arith.constant 0 : index
    %0 = vector.load %arg2[%c0, %c0_0] : memref<8x128xf32, #tpu.memory_space<vmem>>, vector<8x128xf32>
    %c0_1 = arith.constant 0 : index
    %c0_2 = arith.constant 0 : index
    %1 = vector.load %arg3[%c0_1, %c0_2] : memref<8x128xf32, #tpu.memory_space<vmem>>, vector<8x128xf32>
    %2 = arith.truncf %0 : vector<8x128xf32> to vector<8x128xbf16>
    %c0_3 = arith.constant 0 : index
    %c0_4 = arith.constant 0 : index
    %3 = vector.load %arg7[%c0_3, %c0_4] : memref<128x640xbf16, #tpu.memory_space<vmem>>, vector<128x640xbf16>
    %cst = arith.constant dense<0.000000e+00> : vector<8x640xf32>
    %4 = tpu.matmul %2, %3, %cst {dimension_numbers = #tpu.dot_dimension_numbers<[1], [0], [0], [1], [0, 0, 1, 1], [], []>} : vector<8x128xbf16>, vector<128x640xbf16>, vector<8x640xf32> -> vector<8x640xf32>
    %5 = vector.extract_strided_slice %4 {offsets = [0, 0], sizes = [8, 128], strides = [1, 1]} : vector<8x640xf32> to vector<8x128xf32>
    %6 = vector.extract_strided_slice %4 {offsets = [0, 128], sizes = [8, 512], strides = [1, 1]} : vector<8x640xf32> to vector<8x512xf32>
    %c0_5 = arith.constant 0 : index
    %c0_6 = arith.constant 0 : index
    %7 = vector.load %arg1[%c0_5, %c0_6] : memref<128x128xbf16, #tpu.memory_space<vmem>>, vector<128x128xbf16>
    %c0_7 = arith.constant 0 : index
    %c0_8 = arith.constant 0 : index
    %8 = vector.load %arg4[%c0_7, %c0_8] : memref<128x128xbf16, #tpu.memory_space<vmem>>, vector<128x128xbf16>
    %cst_9 = arith.constant dense<0.000000e+00> : vector<128x128xf32>
    %9 = tpu.matmul %7, %8, %cst_9 {dimension_numbers = #tpu.dot_dimension_numbers<[1], [0], [0], [1], [0, 0, 1, 1], [], []>} : vector<128x128xbf16>, vector<128x128xbf16>, vector<128x128xf32> -> vector<128x128xf32>
    %10 = vector.shape_cast %9 : vector<128x128xf32> to vector<16x8x128xf32>
    %11 = vector.shape_cast %5 : vector<8x128xf32> to vector<1x8x128xf32>
    %12 = vector.broadcast %11 : vector<1x8x128xf32> to vector<16x8x128xf32>
    %13 = arith.addf %10, %12 : vector<16x8x128xf32>
    %c0_10 = arith.constant 0 : index
    %c0_11 = arith.constant 0 : index
    %14 = vector.load %arg5[%c0_10, %c0_11] : memref<1x128xf32, #tpu.memory_space<vmem>>, vector<1x128xf32>
    %15 = vector.shape_cast %14 : vector<1x128xf32> to vector<1x1x128xf32>
    %16 = vector.broadcast %15 : vector<1x1x128xf32> to vector<16x8x128xf32>
    %17 = arith.addf %13, %16 : vector<16x8x128xf32>
    %18 = math.tanh %17 : vector<16x8x128xf32>
    %c0_12 = arith.constant 0 : index
    %c0_13 = arith.constant 0 : index
    %19 = vector.load %arg6[%c0_12, %c0_13] : memref<1x128xf32, #tpu.memory_space<vmem>>, vector<1x128xf32>
    %20 = vector.shape_cast %19 : vector<1x128xf32> to vector<1x1x128xf32>
    %21 = vector.broadcast %20 : vector<1x1x128xf32> to vector<16x8x128xf32>
    %22 = arith.mulf %18, %21 : vector<16x8x128xf32>
    %cst_14 = arith.constant dense<0.000000e+00> : vector<16x8xf32>
    %23 = vector.multi_reduction <add>, %22, %cst_14 [2] : vector<16x8x128xf32> to vector<16x8xf32>
    %cst_15 = arith.constant dense<0xFF800000> : vector<16xf32>
    %24 = vector.multi_reduction <maximumf>, %23, %cst_15 [1] : vector<16x8xf32> to vector<16xf32>
    %25 = vector.shape_cast %24 : vector<16xf32> to vector<16x1xf32>
    %26 = vector.broadcast %25 : vector<16x1xf32> to vector<16x8xf32>
    %27 = arith.subf %23, %26 : vector<16x8xf32>
    %28 = math.exp %27 : vector<16x8xf32>
    %cst_16 = arith.constant dense<0.000000e+00> : vector<16xf32>
    %29 = vector.multi_reduction <add>, %28, %cst_16 [1] : vector<16x8xf32> to vector<16xf32>
    %30 = vector.shape_cast %29 : vector<16xf32> to vector<16x1xf32>
    %31 = tpu.reciprocal %30 {approx = true} : vector<16x1xf32> -> vector<16x1xf32>
    %32 = vector.broadcast %31 : vector<16x1xf32> to vector<16x8xf32>
    %33 = arith.mulf %28, %32 : vector<16x8xf32>
    %34 = arith.extf %7 : vector<128x128xbf16> to vector<128x128xf32>
    %35 = vector.shape_cast %34 : vector<128x128xf32> to vector<16x8x128xf32>
    %36 = vector.shape_cast %33 : vector<16x8xf32> to vector<16x8x1xf32>
    %37 = vector.broadcast %36 : vector<16x8x1xf32> to vector<16x8x128xf32>
    %38 = arith.mulf %37, %35 : vector<16x8x128xf32>
    %cst_17 = arith.constant dense<0.000000e+00> : vector<8x128xf32>
    %39 = vector.multi_reduction <add>, %38, %cst_17 [0] : vector<16x8x128xf32> to vector<8x128xf32>
    %c0_18 = arith.constant 0 : index
    %c0_19 = arith.constant 0 : index
    %40 = vector.load %arg0[%c0_18, %c0_19] : memref<8x128xbf16, #tpu.memory_space<vmem>>, vector<8x128xbf16>
    %41 = arith.truncf %39 : vector<8x128xf32> to vector<8x128xbf16>
    %42 = tpu.concatenate %40, %41 in 1 : vector<8x128xbf16>, vector<8x128xbf16> -> vector<8x256xbf16>
    %c0_20 = arith.constant 0 : index
    %c0_21 = arith.constant 0 : index
    %43 = vector.load %arg8[%c0_20, %c0_21] : memref<256x512xbf16, #tpu.memory_space<vmem>>, vector<256x512xbf16>
    %cst_22 = arith.constant dense<0.000000e+00> : vector<8x512xf32>
    %44 = tpu.matmul %42, %43, %cst_22 {dimension_numbers = #tpu.dot_dimension_numbers<[1], [0], [0], [1], [0, 0, 1, 1], [], []>} : vector<8x256xbf16>, vector<256x512xbf16>, vector<8x512xf32> -> vector<8x512xf32>
    %45 = arith.addf %44, %6 : vector<8x512xf32>
    %c0_23 = arith.constant 0 : index
    %c0_24 = arith.constant 0 : index
    %46 = vector.load %arg9[%c0_23, %c0_24] : memref<1x512xf32, #tpu.memory_space<vmem>>, vector<1x512xf32>
    %47 = vector.broadcast %46 : vector<1x512xf32> to vector<8x512xf32>
    %48 = arith.addf %45, %47 : vector<8x512xf32>
    %49 = vector.extract_strided_slice %48 {offsets = [0, 0], sizes = [8, 128], strides = [1, 1]} : vector<8x512xf32> to vector<8x128xf32>
    %50 = arith.negf %49 : vector<8x128xf32>
    %51 = math.exp %50 : vector<8x128xf32>
    %cst_25 = arith.constant 1.000000e+00 : f32
    %52 = vector.broadcast %cst_25 : f32 to vector<8x128xf32>
    %53 = arith.addf %52, %51 : vector<8x128xf32>
    %54 = arith.divf %52, %53 : vector<8x128xf32>
    %55 = vector.extract_strided_slice %48 {offsets = [0, 128], sizes = [8, 128], strides = [1, 1]} : vector<8x512xf32> to vector<8x128xf32>
    %56 = arith.negf %55 : vector<8x128xf32>
    %57 = math.exp %56 : vector<8x128xf32>
    %cst_26 = arith.constant 1.000000e+00 : f32
    %58 = vector.broadcast %cst_26 : f32 to vector<8x128xf32>
    %59 = arith.addf %58, %57 : vector<8x128xf32>
    %60 = arith.divf %58, %59 : vector<8x128xf32>
    %61 = vector.extract_strided_slice %48 {offsets = [0, 256], sizes = [8, 128], strides = [1, 1]} : vector<8x512xf32> to vector<8x128xf32>
    %62 = math.tanh %61 : vector<8x128xf32>
    %63 = vector.extract_strided_slice %48 {offsets = [0, 384], sizes = [8, 128], strides = [1, 1]} : vector<8x512xf32> to vector<8x128xf32>
    %64 = arith.negf %63 : vector<8x128xf32>
    %65 = math.exp %64 : vector<8x128xf32>
    %cst_27 = arith.constant 1.000000e+00 : f32
    %66 = vector.broadcast %cst_27 : f32 to vector<8x128xf32>
    %67 = arith.addf %66, %65 : vector<8x128xf32>
    %68 = arith.divf %66, %67 : vector<8x128xf32>
    %69 = arith.mulf %60, %1 : vector<8x128xf32>
    %70 = arith.mulf %54, %62 : vector<8x128xf32>
    %71 = arith.addf %69, %70 : vector<8x128xf32>
    %72 = math.tanh %71 : vector<8x128xf32>
    %73 = arith.mulf %68, %72 : vector<8x128xf32>
    %74 = arith.truncf %73 : vector<8x128xf32> to vector<8x128xbf16>
    %c0_28 = arith.constant 0 : index
    %c0_29 = arith.constant 0 : index
    %75 = vector.load %arg10[%c0_28, %c0_29] : memref<128x384xbf16, #tpu.memory_space<vmem>>, vector<128x384xbf16>
    %cst_30 = arith.constant dense<0.000000e+00> : vector<8x384xf32>
    %76 = tpu.matmul %74, %75, %cst_30 {dimension_numbers = #tpu.dot_dimension_numbers<[1], [0], [0], [1], [0, 0, 1, 1], [], []>} : vector<8x128xbf16>, vector<128x384xbf16>, vector<8x384xf32> -> vector<8x384xf32>
    %c0_31 = arith.constant 0 : index
    %c0_32 = arith.constant 0 : index
    %77 = vector.load %arg11[%c0_31, %c0_32] : memref<1x384xf32, #tpu.memory_space<vmem>>, vector<1x384xf32>
    %78 = vector.broadcast %77 : vector<1x384xf32> to vector<8x384xf32>
    %79 = arith.addf %76, %78 : vector<8x384xf32>
    %80 = tpu.iota {dimensions = array<i32: 0>} : vector<8x128xi32>
    %81 = tpu.iota {dimensions = array<i32: 1>} : vector<8x128xi32>
    %82 = arith.cmpi eq, %80, %81 : vector<8x128xi32>
    %83 = arith.extui %82 : vector<8x128xi1> to vector<8x128xi32>
    %84 = arith.sitofp %83 : vector<8x128xi32> to vector<8x128xf32>
    %cst_33 = arith.constant dense<0.000000e+00> : vector<16x128xf32>
    %85 = tpu.matmul %23, %84, %cst_33 {dimension_numbers = #tpu.dot_dimension_numbers<[1], [0], [0], [1], [0, 0, 1, 1], [], []>} : vector<16x8xf32>, vector<8x128xf32>, vector<16x128xf32> -> vector<16x128xf32>
    %cst_34 = arith.constant 0.000000e+00 : f32
    %86 = vector.broadcast %cst_34 : f32 to vector<112x128xf32>
    %87 = tpu.concatenate %85, %86 in 0 : vector<16x128xf32>, vector<112x128xf32> -> vector<128x128xf32>
    %88 = tpu.transpose %87, [1, 0] : vector<128x128xf32> -> vector<128x128xf32>
    %89 = vector.extract_strided_slice %88 {offsets = [0, 0], sizes = [8, 128], strides = [1, 1]} : vector<128x128xf32> to vector<8x128xf32>
    %c0_35 = arith.constant 0 : index
    %c0_36 = arith.constant 0 : index
    %90 = vector.load %arg12[%c0_35, %c0_36] : memref<8x128xf32, #tpu.memory_space<vmem>>, vector<8x128xf32>
    tpu.vector_store %arg12[%c0_35, %c0_36], %89 {strides = array<i32>} : memref<8x128xf32, #tpu.memory_space<vmem>>, vector<8x128xf32>,
    %c0_37 = arith.constant 0 : index
    %c0_38 = arith.constant 0 : index
    %91 = vector.load %arg13[%c0_37, %c0_38] : memref<8x384xf32, #tpu.memory_space<vmem>>, vector<8x384xf32>
    tpu.vector_store %arg13[%c0_37, %c0_38], %79 {strides = array<i32>} : memref<8x384xf32, #tpu.memory_space<vmem>>, vector<8x384xf32>,
    %c0_39 = arith.constant 0 : index
    %c0_40 = arith.constant 0 : index
    %92 = vector.load %arg14[%c0_39, %c0_40] : memref<8x128xf32, #tpu.memory_space<vmem>>, vector<8x128xf32>
    tpu.vector_store %arg14[%c0_39, %c0_40], %73 {strides = array<i32>} : memref<8x128xf32, #tpu.memory_space<vmem>>, vector<8x128xf32>,
    %c0_41 = arith.constant 0 : index
    %c0_42 = arith.constant 0 : index
    %93 = vector.load %arg15[%c0_41, %c0_42] : memref<8x128xf32, #tpu.memory_space<vmem>>, vector<8x128xf32>
    tpu.vector_store %arg15[%c0_41, %c0_42], %71 {strides = array<i32>} : memref<8x128xf32, #tpu.memory_space<vmem>>, vector<8x128xf32>,
    return
  }
}

</mosaic_0001>

<llo_original>
// kernel: ptr_decoder_forward.1
$region0: #{ptr_decoder_forward.1}
  #allocation0 [shape = 'u32[]', space=smem, size = 0x4, offset = 0x4, fixed_abs, tag = 'smem constant byte address 0x4 - core index']
  #allocation1 [shape = 'u32[144,128]{1,0:T(1,128)}', space=vmem, size = 0x12000, scoped, tag = 'internal scratch']
  %s0 = inlined_call_operand.vmem [shape: bf16[8,128], index: 0, kind: input, shape index: {}]
  %s1 = inlined_call_operand.vmem [shape: bf16[128,128], index: 1, kind: input, shape index: {}]
  %s2 = inlined_call_operand.vmem [shape: f32[8,128], index: 2, kind: input, shape index: {}, may-alias: {2,14}]
  %s3 = inlined_call_operand.vmem [shape: f32[8,128], index: 3, kind: input, shape index: {}, may-alias: {3,15}]
  %s4 = inlined_call_operand.vmem [shape: bf16[128,128], index: 4, kind: input, shape index: {}]
  %s5 = inlined_call_operand.vmem [shape: f32[1,128], index: 5, kind: input, shape index: {}]
  %s6 = inlined_call_operand.vmem [shape: f32[1,128], index: 6, kind: input, shape index: {}]
  %s7 = inlined_call_operand.hbm [shape: bf16[128,640], index: 7, kind: input, shape index: {}]
  %s8 = inlined_call_operand.hbm [shape: bf16[256,512], index: 8, kind: input, shape index: {}]
  %s9 = inlined_call_operand.vmem [shape: f32[1,512], index: 9, kind: input, shape index: {}]
  %s10 = inlined_call_operand.vmem [shape: bf16[128,384], index: 10, kind: input, shape index: {}]
  %s11 = inlined_call_operand.vmem [shape: f32[1,384], index: 11, kind: input, shape index: {}]
  %s12 = inlined_call_operand.hbm [shape: f32[8,128], index: 12, kind: output, shape index: {0}]
  %s13 = inlined_call_operand.vmem [shape: f32[8,384], index: 13, kind: output, shape index: {1}]
  %s14 = inlined_call_operand.vmem [shape: f32[8,128], index: 14, kind: output, shape index: {2}, may-alias: {2,14}]
  %s15 = inlined_call_operand.vmem [shape: f32[8,128], index: 15, kind: output, shape index: {3}, may-alias: {3,15}]
  %16 = xla_tuple %s12, %s13, %s14, %s15
  %s17 = sld [smem:[#allocation0]]
  $region90: #{ptr_decoder_forward.1} parent=0
    _
  %s19 = ssub.s32 1, %s17
  %s20 = scalar_select 0, %s19, %s17
  $region1: #{ptr_decoder_forward.1} parent=0
    #allocation2 [shape = 'u8[163840]{0}', space=vmem, size = 0x28000, scoped, tag = 'input window, operand 7, single buffered']
    #allocation3 [shape = 's32[1]{0}', space=sflag, size = 0x4, scoped, tag = 'scoped memory for ptr_decoder_forward.1']
    #allocation4 [shape = 's32[1]{0}', space=sflag, size = 0x4, scoped, tag = 'scoped memory for ptr_decoder_forward.1']
    #allocation5 [shape = 'u8[262144]{0}', space=vmem, size = 0x40000, scoped, tag = 'input window, operand 8, single buffered']
    #allocation6 [shape = 's32[1]{0}', space=sflag, size = 0x4, scoped, tag = 'scoped memory for ptr_decoder_forward.1']
    #allocation7 [shape = 'u8[4096]{0}', space=vmem, size = 0x1000, scoped, tag = 'output window, operand 0, single buffered']
    %21 = vsyncpa [#allocation3], 0
    %22 = vsyncpa [#allocation6], 0
    %23 = vsyncpa [#allocation4], 0
    // Predicated region
    $region2: #{ptr_decoder_forward.1} parent=1 // pred_check
      _
    $region3: #{ptr_decoder_forward.1} parent=1 // pred_check_branch
      %25 = sbr.rel (0) target = $region5
    $region4: #{ptr_decoder_forward.1} parent=1 // pred_region
      _
    $region5: #{ptr_decoder_forward.1} parent=1 // pred_fallthru
      _
    // Predicated region
    $region6: #{ptr_decoder_forward.1} parent=1 // pred_check
      _
    $region7: #{ptr_decoder_forward.1} parent=1 // pred_check_branch
      %27 = sbr.rel (0) target = $region9
    $region8: #{ptr_decoder_forward.1} parent=1 // pred_region
      _
    $region9: #{ptr_decoder_forward.1} parent=1 // pred_fallthru
      _
    // Predicated region
    $region10: #{ptr_decoder_forward.1} parent=1 // pred_check
      _
    $region11: #{ptr_decoder_forward.1} parent=1 // pred_check_branch
      %29 = sbr.rel (0) target = $region13
    $region12: #{ptr_decoder_forward.1} parent=1 // pred_region
      _
    $region13: #{ptr_decoder_forward.1} parent=1 // pred_fallthru
      _
    // Predicated region
    $region14: #{ptr_decoder_forward.1} parent=1 // pred_check
      _
    $region15: #{ptr_decoder_forward.1} parent=1 // pred_check_branch
      %31 = sbr.rel (0) target = $region17
    $region16: #{ptr_decoder_forward.1} parent=1 // pred_region
      _
    $region17: #{ptr_decoder_forward.1} parent=1 // pred_fallthru
      _
    // Predicated region
    $region18: #{ptr_decoder_forward.1} parent=1 // pred_check
      _
    $region19: #{ptr_decoder_forward.1} parent=1 // pred_check_branch
      %33 = sbr.rel (0) target = $region21
    $region20: #{ptr_decoder_forward.1} parent=1 // pred_region
      _
    $region21: #{ptr_decoder_forward.1} parent=1 // pred_fallthru
      _
    // Predicated region
    $region22: #{ptr_decoder_forward.1} parent=1 // pred_check
      _
    $region23: #{ptr_decoder_forward.1} parent=1 // pred_check_branch
      %35 = sbr.rel (0) target = $region25
    $region24: #{ptr_decoder_forward.1} parent=1 // pred_region
      _
    $region25: #{ptr_decoder_forward.1} parent=1 // pred_fallthru
      _
    // Predicated region
    $region26: #{ptr_decoder_forward.1} parent=1 // pred_check
      _
    $region27: #{ptr_decoder_forward.1} parent=1 // pred_check_branch
      %37 = sbr.rel (0) target = $region29
    $region28: #{ptr_decoder_forward.1} parent=1 // pred_region
      _
    $region29: #{ptr_decoder_forward.1} parent=1 // pred_fallthru
      _
    // Predicated region
    $region30: #{ptr_decoder_forward.1} parent=1 // pred_check
      _
    $region31: #{ptr_decoder_forward.1} parent=1 // pred_check_branch
      %39 = sbr.rel (0) target = $region33
    $region32: #{ptr_decoder_forward.1} parent=1 // pred_region
      %s41 = ssub.s32 5120, 5120
      %42 = vsyncadd [#allocation3], %s41
      %s43 = sshll.u32 [#allocation2], 4
      %s44 = int_to_ptr.vmem [resolvable:$true] %s43
      %49 = dma.hbm_to_vmem [thread:$0]  %s7, 5120, %s44, [#allocation3], 320, 320, 20
    $region33: #{ptr_decoder_forward.1} parent=1 // pred_fallthru
      _
    // Predicated region
    $region34: #{ptr_decoder_forward.1} parent=1 // pred_check
      _
    $region35: #{ptr_decoder_forward.1} parent=1 // pred_check_branch
      %51 = sbr.rel (0) target = $region37
    $region36: #{ptr_decoder_forward.1} parent=1 // pred_region
      %s53 = ssub.s32 8192, 8192
      %54 = vsyncadd [#allocation6], %s53
      %s55 = sshll.u32 [#allocation5], 4
      %s56 = int_to_ptr.vmem [resolvable:$true] %s55
      %61 = dma.hbm_to_vmem [thread:$0]  %s8, 8192, %s56, [#allocation6], 256, 256, 16
    $region37: #{ptr_decoder_forward.1} parent=1 // pred_fallthru
      _
    // Predicated region
    $region38: #{ptr_decoder_forward.1} parent=1 // pred_check
      _
    $region39: #{ptr_decoder_forward.1} parent=1 // pred_check_branch
      %63 = sbr.rel (0) target = $region41
    $region40: #{ptr_decoder_forward.1} parent=1 // pred_region
      _
    $region41: #{ptr_decoder_forward.1} parent=1 // pred_fallthru
      _
    // Predicated region
    $region42: #{ptr_decoder_forward.1} parent=1 // pred_check
      _
    $region43: #{ptr_decoder_forward.1} parent=1 // pred_check_branch
      %65 = sbr.rel (0) target = $region45
    $region44: #{ptr_decoder_forward.1} parent=1 // pred_region
      _
    $region45: #{ptr_decoder_forward.1} parent=1 // pred_fallthru
      _
    // Predicated region
    $region46: #{ptr_decoder_forward.1} parent=1 // pred_check
      _
    $region47: #{ptr_decoder_forward.1} parent=1 // pred_check_branch
      %67 = sbr.rel (0) target = $region49
    $region48: #{ptr_decoder_forward.1} parent=1 // pred_region
      _
    $region49: #{ptr_decoder_forward.1} parent=1 // pred_fallthru
      _
    // Predicated region
    $region50: #{ptr_decoder_forward.1} parent=1 // pred_check
      _
    $region51: #{ptr_decoder_forward.1} parent=1 // pred_check_branch
      %69 = sbr.rel (0) target = $region53
    $region52: #{ptr_decoder_forward.1} parent=1 // pred_region
      %70 = dma.done [#allocation3], 5120
    $region53: #{ptr_decoder_forward.1} parent=1 // pred_fallthru
      _
    // Predicated region
    $region54: #{ptr_decoder_forward.1} parent=1 // pred_check
      _
    $region55: #{ptr_decoder_forward.1} parent=1 // pred_check_branch
      %72 = sbr.rel (0) target = $region57
    $region56: #{ptr_decoder_forward.1} parent=1 // pred_region
      %73 = dma.done [#allocation6], 8192
    $region57: #{ptr_decoder_forward.1} parent=1 // pred_fallthru
      _
    %v75 = vld [vmem:[%s2] sm:$0xff]
    %v76 = vld [vmem:[%s3] sm:$0xff]
    %v77 = vpack.c.bf16 %v75, %v75
    %v78 = vld [vmem:[#allocation2] sm:$0xff]
    %v79 = vld [vmem:[#allocation2 + $0x8] sm:$0xff]
    %v80 = vld [vmem:[#allocation2 + $0x10] sm:$0xf]
    %v81 = vld [vmem:[#allocation2 + $0x14] sm:$0xff]
    %v82 = vld [vmem:[#allocation2 + $0x1c] sm:$0xff]
    %v83 = vld [vmem:[#allocation2 + $0x24] sm:$0xf]
    %v84 = vld [vmem:[#allocation2 + $0x28] sm:$0xff]
    %v85 = vld [vmem:[#allocation2 + $0x30] sm:$0xff]
    %v86 = vld [vmem:[#allocation2 + $0x38] sm:$0xf]
    %v87 = vld [vmem:[#allocation2 + $0x3c] sm:$0xff]
    %v88 = vld [vmem:[#allocation2 + $0x44] sm:$0xff]
    %v89 = vld [vmem:[#allocation2 + $0x4c] sm:$0xf]
    %v90 = vld [vmem:[#allocation2 + $0x50] sm:$0xff]
    %v91 = vld [vmem:[#allocation2 + $0x58] sm:$0xff]
    %v92 = vld [vmem:[#allocation2 + $0x60] sm:$0xf]
    %v93 = vld [vmem:[#allocation2 + $0x64] sm:$0xff]
    %v94 = vld [vmem:[#allocation2 + $0x6c] sm:$0xff]
    %v95 = vld [vmem:[#allocation2 + $0x74] sm:$0xf]
    %v96 = vld [vmem:[#allocation2 + $0x78] sm:$0xff]
    %v97 = vld [vmem:[#allocation2 + $0x80] sm:$0xff]
    %v98 = vld [vmem:[#allocation2 + $0x88] sm:$0xf]
    %v99 = vld [vmem:[#allocation2 + $0x8c] sm:$0xff]
    %v100 = vld [vmem:[#allocation2 + $0x94] sm:$0xff]
    %v101 = vld [vmem:[#allocation2 + $0x9c] sm:$0xf]
    %v102 = vld [vmem:[#allocation2 + $0xa0] sm:$0xff]
    %v103 = vld [vmem:[#allocation2 + $0xa8] sm:$0xff]
    %v104 = vld [vmem:[#allocation2 + $0xb0] sm:$0xf]
    %v105 = vld [vmem:[#allocation2 + $0xb4] sm:$0xff]
    %v106 = vld [vmem:[#allocation2 + $0xbc] sm:$0xff]
    %v107 = vld [vmem:[#allocation2 + $0xc4] sm:$0xf]
    %v108 = vld [vmem:[#allocation2 + $0xc8] sm:$0xff]
    %v109 = vld [vmem:[#allocation2 + $0xd0] sm:$0xff]
    %v110 = vld [vmem:[#allocation2 + $0xd8] sm:$0xf]
    %v111 = vld [vmem:[#allocation2 + $0xdc] sm:$0xff]
    %v112 = vld [vmem:[#allocation2 + $0xe4] sm:$0xff]
    %v113 = vld [vmem:[#allocation2 + $0xec] sm:$0xf]
    %v114 = vld [vmem:[#allocation2 + $0xf0] sm:$0xff]
    %v115 = vld [vmem:[#allocation2 + $0xf8] sm:$0xff]
    %v116 = vld [vmem:[#allocation2 + $0x100] sm:$0xf]
    %v117 = vld [vmem:[#allocation2 + $0x104] sm:$0xff]
    %v118 = vld [vmem:[#allocation2 + $0x10c] sm:$0xff]
    %v119 = vld [vmem:[#allocation2 + $0x114] sm:$0xf]
    %v120 = vld [vmem:[#allocation2 + $0x118] sm:$0xff]
    %v121 = vld [vmem:[#allocation2 + $0x120] sm:$0xff]
    %v122 = vld [vmem:[#allocation2 + $0x128] sm:$0xf]
    %v123 = vld [vmem:[#allocation2 + $0x12c] sm:$0xff]
    %v124 = vld [vmem:[#allocation2 + $0x134] sm:$0xff]
    %v125 = vld [vmem:[#allocation2 + $0x13c] sm:$0xf]
    %v174 = vunpack.c.l.b16 %v78
    %v175 = vunpack.c.h.b16 %v78
    %v176 = vunpack.c.l.b16 %v79
    %v177 = vunpack.c.h.b16 %v79
    %v178 = vunpack.c.l.b16 %v80
    %v179 = vunpack.c.l.b16 %v81
    %v180 = vunpack.c.h.b16 %v81
    %v181 = vunpack.c.l.b16 %v82
    %v182 = vunpack.c.h.b16 %v82
    %v183 = vunpack.c.l.b16 %v83
    %v184 = vunpack.c.l.b16 %v84
    %v185 = vunpack.c.h.b16 %v84
    %v186 = vunpack.c.l.b16 %v85
    %v187 = vunpack.c.h.b16 %v85
    %v188 = vunpack.c.l.b16 %v86
    %v189 = vunpack.c.l.b16 %v87
    %v190 = vunpack.c.h.b16 %v87
    %v191 = vunpack.c.l.b16 %v88
    %v192 = vunpack.c.h.b16 %v88
    %v193 = vunpack.c.l.b16 %v89
    %v194 = vunpack.c.l.b16 %v90
    %v195 = vunpack.c.h.b16 %v90
    %v196 = vunpack.c.l.b16 %v91
    %v197 = vunpack.c.h.b16 %v91
    %v198 = vunpack.c.l.b16 %v92
    %v199 = vunpack.c.l.b16 %v93
    %v200 = vunpack.c.h.b16 %v93
    %v201 = vunpack.c.l.b16 %v94
    %v202 = vunpack.c.h.b16 %v94
    %v203 = vunpack.c.l.b16 %v95
    %v204 = vunpack.c.l.b16 %v96
    %v205 = vunpack.c.h.b16 %v96
    %v206 = vunpack.c.l.b16 %v97
    %v207 = vunpack.c.h.b16 %v97
    %v208 = vunpack.c.l.b16 %v98
    %v209 = vunpack.c.l.b16 %v99
    %v210 = vunpack.c.h.b16 %v99
    %v211 = vunpack.c.l.b16 %v100
    %v212 = vunpack.c.h.b16 %v100
    %v213 = vunpack.c.l.b16 %v101
    %v214 = vunpack.c.l.b16 %v102
    %v215 = vunpack.c.h.b16 %v102
    %v216 = vunpack.c.l.b16 %v103
    %v217 = vunpack.c.h.b16 %v103
    %v218 = vunpack.c.l.b16 %v104
    %v219 = vunpack.c.l.b16 %v105
    %v220 = vunpack.c.h.b16 %v105
    %v221 = vunpack.c.l.b16 %v106
    %v222 = vunpack.c.h.b16 %v106
    %v223 = vunpack.c.l.b16 %v107
    %v224 = vunpack.c.l.b16 %v108
    %v225 = vunpack.c.h.b16 %v108
    %v226 = vunpack.c.l.b16 %v109
    %v227 = vunpack.c.h.b16 %v109
    %v228 = vunpack.c.l.b16 %v110
    %v229 = vunpack.c.l.b16 %v111
    %v230 = vunpack.c.h.b16 %v111
    %v231 = vunpack.c.l.b16 %v112
    %v232 = vunpack.c.h.b16 %v112
    %v233 = vunpack.c.l.b16 %v113
    %v234 = vunpack.c.l.b16 %v114
    %v235 = vunpack.c.h.b16 %v114
    %v236 = vunpack.c.l.b16 %v115
    %v237 = vunpack.c.h.b16 %v115
    %v238 = vunpack.c.l.b16 %v116
    %v239 = vunpack.c.l.b16 %v117
    %v240 = vunpack.c.h.b16 %v117
    %v241 = vunpack.c.l.b16 %v118
    %v242 = vunpack.c.h.b16 %v118
    %v243 = vunpack.c.l.b16 %v119
    %v244 = vunpack.c.l.b16 %v120
    %v245 = vunpack.c.h.b16 %v120
    %v246 = vunpack.c.l.b16 %v121
    %v247 = vunpack.c.h.b16 %v121
    %v248 = vunpack.c.l.b16 %v122
    %v249 = vunpack.c.l.b16 %v123
    %v250 = vunpack.c.h.b16 %v123
    %v251 = vunpack.c.l.b16 %v124
    %v252 = vunpack.c.h.b16 %v124
    %v253 = vunpack.c.l.b16 %v125
    %v254 = vpack.c.b16 %v179, %v174
    %v255 = vpack.c.b16 %v180, %v175
    %v256 = vpack.c.b16 %v181, %v176
    %v257 = vpack.c.b16 %v182, %v177
    %v258 = vpack.c.b16 %v183, %v178
    %v259 = vpack.c.b16 %v189, %v184
    %v260 = vpack.c.b16 %v190, %v185
    %v261 = vpack.c.b16 %v191, %v186
    %v262 = vpack.c.b16 %v192, %v187
    %v263 = vpack.c.b16 %v193, %v188
    %v264 = vpack.c.b16 %v199, %v194
    %v265 = vpack.c.b16 %v200, %v195
    %v266 = vpack.c.b16 %v201, %v196
    %v267 = vpack.c.b16 %v202, %v197
    %v268 = vpack.c.b16 %v203, %v198
    %v269 = vpack.c.b16 %v209, %v204
    %v270 = vpack.c.b16 %v210, %v205
    %v271 = vpack.c.b16 %v211, %v206
    %v272 = vpack.c.b16 %v212, %v207
    %v273 = vpack.c.b16 %v213, %v208
    %v274 = vpack.c.b16 %v219, %v214
    %v275 = vpack.c.b16 %v220, %v215
    %v276 = vpack.c.b16 %v221, %v216
    %v277 = vpack.c.b16 %v222, %v217
    %v278 = vpack.c.b16 %v223, %v218
    %v279 = vpack.c.b16 %v229, %v224
    %v280 = vpack.c.b16 %v230, %v225
    %v281 = vpack.c.b16 %v231, %v226
    %v282 = vpack.c.b16 %v232, %v227
    %v283 = vpack.c.b16 %v233, %v228
    %v284 = vpack.c.b16 %v239, %v234
    %v285 = vpack.c.b16 %v240, %v235
    %v286 = vpack.c.b16 %v241, %v236
    %v287 = vpack.c.b16 %v242, %v237
    %v288 = vpack.c.b16 %v243, %v238
    %v289 = vpack.c.b16 %v249, %v244
    %v290 = vpack.c.b16 %v250, %v245
    %v291 = vpack.c.b16 %v251, %v246
    %v292 = vpack.c.b16 %v252, %v247
    %v293 = vpack.c.b16 %v253, %v248
    %334 = vmatprep.subr.bf16.mxu0 %v255
    %335 = vmatpush1.bf16.msra.mxu0 %v254
    %336 = vmatprep.subr.bf16.mxu0 %v260
    %337 = vmatpush1.bf16.msra.mxu0 %v259
    %338 = vmatprep.subr.bf16.mxu0 %v265
    %339 = vmatpush1.bf16.msra.mxu0 %v264
    %340 = vmatprep.subr.bf16.mxu0 %v270
    %341 = vmatpush1.bf16.msra.mxu0 %v269
    %342 = vmatprep.subr.bf16.mxu0 %v275
    %343 = vmatpush1.bf16.msra.mxu0 %v274
    %344 = vmatprep.subr.bf16.mxu0 %v280
    %345 = vmatpush1.bf16.msra.mxu0 %v279
    %346 = vmatprep.subr.bf16.mxu0 %v285
    %347 = vmatpush1.bf16.msra.mxu0 %v284
    %348 = vmatprep.subr.bf16.mxu0 %v290
    %349 = vmatpush1.bf16.msra.mxu0 %v289
    %350 = vmatprep.subr.bf16.mxu0 0
    %351 = vmatpush1.bf16.msra.mxu0 0
    %352 = vmatprep.subr.bf16.mxu0 0
    %353 = vmatpush1.bf16.msra.mxu0 0
    %354 = vmatprep.subr.bf16.mxu0 0
    %355 = vmatpush1.bf16.msra.mxu0 0
    %356 = vmatprep.subr.bf16.mxu0 0
    %357 = vmatpush1.bf16.msra.mxu0 0
    %358 = vmatprep.subr.bf16.mxu0 0
    %359 = vmatpush1.bf16.msra.mxu0 0
    %360 = vmatprep.subr.bf16.mxu0 0
    %361 = vmatpush1.bf16.msra.mxu0 0
    %362 = vmatprep.subr.bf16.mxu0 0
    %363 = vmatpush1.bf16.msra.mxu0 0
    %364 = vmatprep.subr.bf16.mxu0 0
    %365 = vmatpush1.bf16.msra.mxu0 0
    %366 = vmatprep.mubr.bf16.mxu0 0
    %367 = vmatmul.mubr.bf16.gmra.mrb[0].mxu0 %v77
    %v368 = vpop.f32.mrb[0].mxu0
    %v369 = vadd.f32 0.0, %v368
    %v370 = vpop.f32.mrb[0].mxu0
    %v371 = vadd.f32 0.0, %v370
    %v372 = vpop.f32.mrb[0].mxu0
    %v373 = vpop.f32.mrb[0].mxu0
    %374 = vdwg.mxu0
    %375 = vmatprep.subr.bf16.mxu0 %v257
    %376 = vmatpush1.bf16.msra.mxu0 %v256
    %377 = vmatprep.subr.bf16.mxu0 %v262
    %378 = vmatpush1.bf16.msra.mxu0 %v261
    %379 = vmatprep.subr.bf16.mxu0 %v267
    %380 = vmatpush1.bf16.msra.mxu0 %v266
    %381 = vmatprep.subr.bf16.mxu0 %v272
    %382 = vmatpush1.bf16.msra.mxu0 %v271
    %383 = vmatprep.subr.bf16.mxu0 %v277
    %384 = vmatpush1.bf16.msra.mxu0 %v276
    %385 = vmatprep.subr.bf16.mxu0 %v282
    %386 = vmatpush1.bf16.msra.mxu0 %v281
    %387 = vmatprep.subr.bf16.mxu0 %v287
    %388 = vmatpush1.bf16.msra.mxu0 %v286
    %389 = vmatprep.subr.bf16.mxu0 %v292
    %390 = vmatpush1.bf16.msra.mxu0 %v291
    %391 = vmatprep.subr.bf16.mxu0 0
    %392 = vmatpush1.bf16.msra.mxu0 0
    %393 = vmatprep.subr.bf16.mxu0 0
    %394 = vmatpush1.bf16.msra.mxu0 0
    %395 = vmatprep.subr.bf16.mxu0 0
    %396 = vmatpush1.bf16.msra.mxu0 0
    %397 = vmatprep.subr.bf16.mxu0 0
    %398 = vmatpush1.bf16.msra.mxu0 0
    %399 = vmatprep.subr.bf16.mxu0 0
    %400 = vmatpush1.bf16.msra.mxu0 0
    %401 = vmatprep.subr.bf16.mxu0 0
    %402 = vmatpush1.bf16.msra.mxu0 0
    %403 = vmatprep.subr.bf16.mxu0 0
    %404 = vmatpush1.bf16.msra.mxu0 0
    %405 = vmatprep.subr.bf16.mxu0 0
    %406 = vmatpush1.bf16.msra.mxu0 0
    %407 = vmatprep.mubr.bf16.mxu0 0
    %408 = vmatmul.mubr.bf16.gmra.mrb[0].mxu0 %v77
    %v409 = vpop.f32.mrb[0].mxu0
    %v410 = vadd.f32 0.0, %v409
    %v411 = vpop.f32.mrb[0].mxu0
    %v412 = vadd.f32 0.0, %v411
    %v413 = vpop.f32.mrb[0].mxu0
    %v414 = vpop.f32.mrb[0].mxu0
    %415 = vdwg.mxu0
    %416 = vmatprep.subr.bf16.mxu0 0
    %417 = vmatpush1.bf16.msra.mxu0 %v258
    %418 = vmatprep.subr.bf16.mxu0 0
    %419 = vmatpush1.bf16.msra.mxu0 %v263
    %420 = vmatprep.subr.bf16.mxu0 0
    %421 = vmatpush1.bf16.msra.mxu0 %v268
    %422 = vmatprep.subr.bf16.mxu0 0
    %423 = vmatpush1.bf16.msra.mxu0 %v273
    %424 = vmatprep.subr.bf16.mxu0 0
    %425 = vmatpush1.bf16.msra.mxu0 %v278
    %426 = vmatprep.subr.bf16.mxu0 0
    %427 = vmatpush1.bf16.msra.mxu0 %v283
    %428 = vmatprep.subr.bf16.mxu0 0
    %429 = vmatpush1.bf16.msra.mxu0 %v288
    %430 = vmatprep.subr.bf16.mxu0 0
    %431 = vmatpush1.bf16.msra.mxu0 %v293
    %432 = vmatprep.subr.bf16.mxu0 0
    %433 = vmatpush1.bf16.msra.mxu0 0
    %434 = vmatprep.subr.bf16.mxu0 0
    %435 = vmatpush1.bf16.msra.mxu0 0
    %436 = vmatprep.subr.bf16.mxu0 0
    %437 = vmatpush1.bf16.msra.mxu0 0
    %438 = vmatprep.subr.bf16.mxu0 0
    %439 = vmatpush1.bf16.msra.mxu0 0
    %440 = vmatprep.subr.bf16.mxu0 0
    %441 = vmatpush1.bf16.msra.mxu0 0
    %442 = vmatprep.subr.bf16.mxu0 0
    %443 = vmatpush1.bf16.msra.mxu0 0
    %444 = vmatprep.subr.bf16.mxu0 0
    %445 = vmatpush1.bf16.msra.mxu0 0
    %446 = vmatprep.subr.bf16.mxu0 0
    %447 = vmatpush1.bf16.msra.mxu0 0
    %448 = vmatprep.mubr.bf16.mxu0 0
    %449 = vmatmul.mubr.bf16.gmra.mrb[0].mxu0 %v77
    %v450 = vpop.f32.mrb[0].mxu0
    %v451 = vadd.f32 0.0, %v450
    %v452 = vpop.f32.mrb[0].mxu0
    %v453 = vpop.f32.mrb[0].mxu0
    %v454 = vpop.f32.mrb[0].mxu0
    %455 = vdwg.mxu0
    %v456 = vld [vmem:[%s1] sm:$0xf]
    %v457 = vld [vmem:[%s1 + $0x4] sm:$0xf]
    %v458 = vld [vmem:[%s1 + $0x8] sm:$0xf]
    %v459 = vld [vmem:[%s1 + $0xc] sm:$0xf]
    %v460 = vld [vmem:[%s1 + $0x10] sm:$0xf]
    %v461 = vld [vmem:[%s1 + $0x14] sm:$0xf]
    %v462 = vld [vmem:[%s1 + $0x18] sm:$0xf]
    %v463 = vld [vmem:[%s1 + $0x1c] sm:$0xf]
    %v464 = vld [vmem:[%s1 + $0x20] sm:$0xf]
    %v465 = vld [vmem:[%s1 + $0x24] sm:$0xf]
    %v466 = vld [vmem:[%s1 + $0x28] sm:$0xf]
    %v467 = vld [vmem:[%s1 + $0x2c] sm:$0xf]
    %v468 = vld [vmem:[%s1 + $0x30] sm:$0xf]
    %v469 = vld [vmem:[%s1 + $0x34] sm:$0xf]
    %v470 = vld [vmem:[%s1 + $0x38] sm:$0xf]
    %v471 = vld [vmem:[%s1 + $0x3c] sm:$0xf]
    %v472 = vld [vmem:[%s4] sm:$0xf]
    %v473 = vld [vmem:[%s4 + $0x4] sm:$0xf]
    %v474 = vld [vmem:[%s4 + $0x8] sm:$0xf]
    %v475 = vld [vmem:[%s4 + $0xc] sm:$0xf]
    %v476 = vld [vmem:[%s4 + $0x10] sm:$0xf]
    %v477 = vld [vmem:[%s4 + $0x14] sm:$0xf]
    %v478 = vld [vmem:[%s4 + $0x18] sm:$0xf]
    %v479 = vld [vmem:[%s4 + $0x1c] sm:$0xf]
    %v480 = vld [vmem:[%s4 + $0x20] sm:$0xf]
    %v481 = vld [vmem:[%s4 + $0x24] sm:$0xf]
    %v482 = vld [vmem:[%s4 + $0x28] sm:$0xf]
    %v483 = vld [vmem:[%s4 + $0x2c] sm:$0xf]
    %v484 = vld [vmem:[%s4 + $0x30] sm:$0xf]
    %v485 = vld [vmem:[%s4 + $0x34] sm:$0xf]
    %v486 = vld [vmem:[%s4 + $0x38] sm:$0xf]
    %v487 = vld [vmem:[%s4 + $0x3c] sm:$0xf]
    %v504 = vunpack.c.l.b16 %v456
    %v505 = vunpack.c.l.b16 %v457
    %v506 = vunpack.c.l.b16 %v458
    %v507 = vunpack.c.l.b16 %v459
    %v508 = vunpack.c.l.b16 %v460
    %v509 = vunpack.c.l.b16 %v461
    %v510 = vunpack.c.l.b16 %v462
    %v511 = vunpack.c.l.b16 %v463
    %v512 = vunpack.c.l.b16 %v464
    %v513 = vunpack.c.l.b16 %v465
    %v514 = vunpack.c.l.b16 %v466
    %v515 = vunpack.c.l.b16 %v467
    %v516 = vunpack.c.l.b16 %v468
    %v517 = vunpack.c.l.b16 %v469
    %v518 = vunpack.c.l.b16 %v470
    %v519 = vunpack.c.l.b16 %v471
    %v520 = vpack.c.b16 %v505, %v504
    %v521 = vpack.c.b16 %v507, %v506
    %v522 = vpack.c.b16 %v509, %v508
    %v523 = vpack.c.b16 %v511, %v510
    %v524 = vpack.c.b16 %v513, %v512
    %v525 = vpack.c.b16 %v515, %v514
    %v526 = vpack.c.b16 %v517, %v516
    %v527 = vpack.c.b16 %v519, %v518
    %v552 = vunpack.c.l.b16 %v472
    %v553 = vunpack.c.l.b16 %v473
    %v554 = vunpack.c.l.b16 %v474
    %v555 = vunpack.c.l.b16 %v475
    %v556 = vunpack.c.l.b16 %v476
    %v557 = vunpack.c.l.b16 %v477
    %v558 = vunpack.c.l.b16 %v478
    %v559 = vunpack.c.l.b16 %v479
    %v560 = vunpack.c.l.b16 %v480
    %v561 = vunpack.c.l.b16 %v481
    %v562 = vunpack.c.l.b16 %v482
    %v563 = vunpack.c.l.b16 %v483
    %v564 = vunpack.c.l.b16 %v484
    %v565 = vunpack.c.l.b16 %v485
    %v566 = vunpack.c.l.b16 %v486
    %v567 = vunpack.c.l.b16 %v487
    %v568 = vpack.c.b16 %v553, %v552
    %v569 = vpack.c.b16 %v555, %v554
    %v570 = vpack.c.b16 %v557, %v556
    %v571 = vpack.c.b16 %v559, %v558
    %v572 = vpack.c.b16 %v561, %v560
    %v573 = vpack.c.b16 %v563, %v562
    %v574 = vpack.c.b16 %v565, %v564
    %v575 = vpack.c.b16 %v567, %v566
    %584 = vmatprep.subr.bf16.mxu0 0
    %585 = vmatpush1.bf16.msra.mxu0 %v568
    %586 = vmatprep.subr.bf16.mxu0 0
    %587 = vmatpush1.bf16.msra.mxu0 %v569
    %588 = vmatprep.subr.bf16.mxu0 0
    %589 = vmatpush1.bf16.msra.mxu0 %v570
    %590 = vmatprep.subr.bf16.mxu0 0
    %591 = vmatpush1.bf16.msra.mxu0 %v571
    %592 = vmatprep.subr.bf16.mxu0 0
    %593 = vmatpush1.bf16.msra.mxu0 %v572
    %594 = vmatprep.subr.bf16.mxu0 0
    %595 = vmatpush1.bf16.msra.mxu0 %v573
    %596 = vmatprep.subr.bf16.mxu0 0
    %597 = vmatpush1.bf16.msra.mxu0 %v574
    %598 = vmatprep.subr.bf16.mxu0 0
    %599 = vmatpush1.bf16.msra.mxu0 %v575
    %600 = vmatprep.subr.bf16.mxu0 0
    %601 = vmatpush1.bf16.msra.mxu0 0
    %602 = vmatprep.subr.bf16.mxu0 0
    %603 = vmatpush1.bf16.msra.mxu0 0
    %604 = vmatprep.subr.bf16.mxu0 0
    %605 = vmatpush1.bf16.msra.mxu0 0
    %606 = vmatprep.subr.bf16.mxu0 0
    %607 = vmatpush1.bf16.msra.mxu0 0
    %608 = vmatprep.subr.bf16.mxu0 0
    %609 = vmatpush1.bf16.msra.mxu0 0
    %610 = vmatprep.subr.bf16.mxu0 0
    %611 = vmatpush1.bf16.msra.mxu0 0
    %612 = vmatprep.subr.bf16.mxu0 0
    %613 = vmatpush1.bf16.msra.mxu0 0
    %614 = vmatprep.subr.bf16.mxu0 0
    %615 = vmatpush1.bf16.msra.mxu0 0
    %616 = vmatprep.mubr.bf16.mxu0 0
    %617 = vmatmul.mubr.bf16.gmra.mrb[0].mxu0 %v520
    %v618 = vpop.f32.mrb[0].mxu0
    %v619 = vadd.f32 0.0, %v618
    %v620 = vpop.f32.mrb[0].mxu0
    %v621 = vpop.f32.mrb[0].mxu0
    %v622 = vadd.f32 0.0, %v621
    %v623 = vpop.f32.mrb[0].mxu0
    %624 = vmatprep.mubr.bf16.mxu0 0
    %625 = vmatmul.mubr.bf16.gmra.mrb[0].mxu0 %v521
    %v626 = vpop.f32.mrb[0].mxu0
    %v627 = vadd.f32 0.0, %v626
    %v628 = vpop.f32.mrb[0].mxu0
    %v629 = vpop.f32.mrb[0].mxu0
    %v630 = vadd.f32 0.0, %v629
    %v631 = vpop.f32.mrb[0].mxu0
    %632 = vmatprep.mubr.bf16.mxu0 0
    %633 = vmatmul.mubr.bf16.gmra.mrb[0].mxu0 %v522
    %v634 = vpop.f32.mrb[0].mxu0
    %v635 = vadd.f32 0.0, %v634
    %v636 = vpop.f32.mrb[0].mxu0
    %v637 = vpop.f32.mrb[0].mxu0
    %v638 = vadd.f32 0.0, %v637
    %v639 = vpop.f32.mrb[0].mxu0
    %640 = vmatprep.mubr.bf16.mxu0 0
    %641 = vmatmul.mubr.bf16.gmra.mrb[0].mxu0 %v523
    %v642 = vpop.f32.mrb[0].mxu0
    %v643 = vadd.f32 0.0, %v642
    %v644 = vpop.f32.mrb[0].mxu0
    %v645 = vpop.f32.mrb[0].mxu0
    %v646 = vadd.f32 0.0, %v645
    %v647 = vpop.f32.mrb[0].mxu0
    %648 = vmatprep.mubr.bf16.mxu0 0
    %649 = vmatmul.mubr.bf16.gmra.mrb[0].mxu0 %v524
    %v650 = vpop.f32.mrb[0].mxu0
    %v651 = vadd.f32 0.0, %v650
    %v652 = vpop.f32.mrb[0].mxu0
    %v653 = vpop.f32.mrb[0].mxu0
    %v654 = vadd.f32 0.0, %v653
    %v655 = vpop.f32.mrb[0].mxu0
    %656 = vmatprep.mubr.bf16.mxu0 0
    %657 = vmatmul.mubr.bf16.gmra.mrb[0].mxu0 %v525
    %v658 = vpop.f32.mrb[0].mxu0
    %v659 = vadd.f32 0.0, %v658
    %v660 = vpop.f32.mrb[0].mxu0
    %v661 = vpop.f32.mrb[0].mxu0
    %v662 = vadd.f32 0.0, %v661
    %v663 = vpop.f32.mrb[0].mxu0
    %664 = vmatprep.mubr.bf16.mxu0 0
    %665 = vmatmul.mubr.bf16.gmra.mrb[0].mxu0 %v526
    %v666 = vpop.f32.mrb[0].mxu0
    %v667 = vadd.f32 0.0, %v666
    %v668 = vpop.f32.mrb[0].mxu0
    %v669 = vpop.f32.mrb[0].mxu0
    %v670 = vadd.f32 0.0, %v669
    %v671 = vpop.f32.mrb[0].mxu0
    %672 = vmatprep.mubr.bf16.mxu0 0
    %673 = vmatmul.mubr.bf16.gmra.mrb[0].mxu0 %v527
    %v674 = vpop.f32.mrb[0].mxu0
    %v675 = vadd.f32 0.0, %v674
    %v676 = vpop.f32.mrb[0].mxu0
    %v677 = vpop.f32.mrb[0].mxu0
    %v678 = vadd.f32 0.0, %v677
    %v679 = vpop.f32.mrb[0].mxu0
    %680 = vdwg.mxu0
    %v681 = vadd.f32 %v619, %v369
    %v682 = vadd.f32 %v622, %v369
    %v683 = vadd.f32 %v627, %v369
    %v684 = vadd.f32 %v630, %v369
    %v685 = vadd.f32 %v635, %v369
    %v686 = vadd.f32 %v638, %v369
    %v687 = vadd.f32 %v643, %v369
    %v688 = vadd.f32 %v646, %v369
    %v689 = vadd.f32 %v651, %v369
    %v690 = vadd.f32 %v654, %v369
    %v691 = vadd.f32 %v659, %v369
    %v692 = vadd.f32 %v662, %v369
    %v693 = vadd.f32 %v667, %v369
    %v694 = vadd.f32 %v670, %v369
    %v695 = vadd.f32 %v675, %v369
    %v696 = vadd.f32 %v678, %v369
    %v697 = vld [vmem:[%s5] sm:$0x1]
    %v699 = vlaneseq
    %v700 = vshrl.u32 %v699, 7
    %v701 = vsub.s32 0, %v700
    %v702 = vrot.slane %v697, %v701
    %v704 = vadd.f32 %v681, %v702
    %v705 = vadd.f32 %v682, %v702
    %v706 = vadd.f32 %v683, %v702
    %v707 = vadd.f32 %v684, %v702
    %v708 = vadd.f32 %v685, %v702
    %v709 = vadd.f32 %v686, %v702
    %v710 = vadd.f32 %v687, %v702
    %v711 = vadd.f32 %v688, %v702
    %v712 = vadd.f32 %v689, %v702
    %v713 = vadd.f32 %v690, %v702
    %v714 = vadd.f32 %v691, %v702
    %v715 = vadd.f32 %v692, %v702
    %v716 = vadd.f32 %v693, %v702
    %v717 = vadd.f32 %v694, %v702
    %v718 = vadd.f32 %v695, %v702
    %v719 = vadd.f32 %v696, %v702
    %v720 = vtanh.pop %v704
    %v721 = vtanh.pop %v705
    %v722 = vtanh.pop %v706
    %v723 = vtanh.pop %v707
    %v724 = vtanh.pop %v708
    %v725 = vtanh.pop %v709
    %v726 = vtanh.pop %v710
    %v727 = vtanh.pop %v711
    %v728 = vtanh.pop %v712
    %v729 = vtanh.pop %v713
    %v730 = vtanh.pop %v714
    %v731 = vtanh.pop %v715
    %v732 = vtanh.pop %v716
    %v733 = vtanh.pop %v717
    %v734 = vtanh.pop %v718
    %v735 = vtanh.pop %v719
    %v736 = vld [vmem:[%s6] sm:$0x1]
    %v738 = vlaneseq
    %v739 = vshrl.u32 %v738, 7
    %v740 = vsub.s32 0, %v739
    %v741 = vrot.slane %v736, %v740
    %v743 = vmul.f32 %v720, %v741
    %v744 = vmul.f32 %v721, %v741
    %v745 = vmul.f32 %v722, %v741
    %v746 = vmul.f32 %v723, %v741
    %v747 = vmul.f32 %v724, %v741
    %v748 = vmul.f32 %v725, %v741
    %v749 = vmul.f32 %v726, %v741
    %v750 = vmul.f32 %v727, %v741
    %v751 = vmul.f32 %v728, %v741
    %v752 = vmul.f32 %v729, %v741
    %v753 = vmul.f32 %v730, %v741
    %v754 = vmul.f32 %v731, %v741
    %v755 = vmul.f32 %v732, %v741
    %v756 = vmul.f32 %v733, %v741
    %v757 = vmul.f32 %v734, %v741
    %v758 = vmul.f32 %v735, %v741
    %759 = vadd.xlane.f32.xlu0 %v743
    %v760 = vpop.xlane.xlu0 %759
    %761 = vadd.xlane.f32.xlu0 %v744
    %v762 = vpop.xlane.xlu0 %761
    %763 = vadd.xlane.f32.xlu0 %v745
    %v764 = vpop.xlane.xlu0 %763
    %765 = vadd.xlane.f32.xlu0 %v746
    %v766 = vpop.xlane.xlu0 %765
    %767 = vadd.xlane.f32.xlu0 %v747
    %v768 = vpop.xlane.xlu0 %767
    %769 = vadd.xlane.f32.xlu0 %v748
    %v770 = vpop.xlane.xlu0 %769
    %771 = vadd.xlane.f32.xlu0 %v749
    %v772 = vpop.xlane.xlu0 %771
    %773 = vadd.xlane.f32.xlu0 %v750
    %v774 = vpop.xlane.xlu0 %773
    %775 = vadd.xlane.f32.xlu0 %v751
    %v776 = vpop.xlane.xlu0 %775
    %777 = vadd.xlane.f32.xlu0 %v752
    %v778 = vpop.xlane.xlu0 %777
    %779 = vadd.xlane.f32.xlu0 %v753
    %v780 = vpop.xlane.xlu0 %779
    %781 = vadd.xlane.f32.xlu0 %v754
    %v782 = vpop.xlane.xlu0 %781
    %783 = vadd.xlane.f32.xlu0 %v755
    %v784 = vpop.xlane.xlu0 %783
    %785 = vadd.xlane.f32.xlu0 %v756
    %v786 = vpop.xlane.xlu0 %785
    %787 = vadd.xlane.f32.xlu0 %v757
    %v788 = vpop.xlane.xlu0 %787
    %789 = vadd.xlane.f32.xlu0 %v758
    %v790 = vpop.xlane.xlu0 %789
    %v807 = vlaneseq
    %v808 = vand.u32 %v807, 127
    %v809 = vlaneseq
    %v810 = vshrl.u32 %v809, 7
    %v811 = vsub.s32 %v808, %v810
    %v812 = vrot.slane %v760, %v811
    %v813 = vlaneseq
    %v814 = vshrl.u32 %v813, 7
    %v815 = vsub.s32 %v808, %v814
    %v816 = vrot.slane %v762, %v815
    %v817 = vlaneseq
    %v818 = vshrl.u32 %v817, 7
    %v819 = vsub.s32 %v808, %v818
    %v820 = vrot.slane %v764, %v819
    %v821 = vlaneseq
    %v822 = vshrl.u32 %v821, 7
    %v823 = vsub.s32 %v808, %v822
    %v824 = vrot.slane %v766, %v823
    %v825 = vlaneseq
    %v826 = vshrl.u32 %v825, 7
    %v827 = vsub.s32 %v808, %v826
    %v828 = vrot.slane %v768, %v827
    %v829 = vlaneseq
    %v830 = vshrl.u32 %v829, 7
    %v831 = vsub.s32 %v808, %v830
    %v832 = vrot.slane %v770, %v831
    %v833 = vlaneseq
    %v834 = vshrl.u32 %v833, 7
    %v835 = vsub.s32 %v808, %v834
    %v836 = vrot.slane %v772, %v835
    %v837 = vlaneseq
    %v838 = vshrl.u32 %v837, 7
    %v839 = vsub.s32 %v808, %v838
    %v840 = vrot.slane %v774, %v839
    %v841 = vlaneseq
    %v842 = vshrl.u32 %v841, 7
    %v843 = vsub.s32 %v808, %v842
    %v844 = vrot.slane %v776, %v843
    %v845 = vlaneseq
    %v846 = vshrl.u32 %v845, 7
    %v847 = vsub.s32 %v808, %v846
    %v848 = vrot.slane %v778, %v847
    %v849 = vlaneseq
    %v850 = vshrl.u32 %v849, 7
    %v851 = vsub.s32 %v808, %v850
    %v852 = vrot.slane %v780, %v851
    %v853 = vlaneseq
    %v854 = vshrl.u32 %v853, 7
    %v855 = vsub.s32 %v808, %v854
    %v856 = vrot.slane %v782, %v855
    %v857 = vlaneseq
    %v858 = vshrl.u32 %v857, 7
    %v859 = vsub.s32 %v808, %v858
    %v860 = vrot.slane %v784, %v859
    %v861 = vlaneseq
    %v862 = vshrl.u32 %v861, 7
    %v863 = vsub.s32 %v808, %v862
    %v864 = vrot.slane %v786, %v863
    %v865 = vlaneseq
    %v866 = vshrl.u32 %v865, 7
    %v867 = vsub.s32 %v808, %v866
    %v868 = vrot.slane %v788, %v867
    %v869 = vlaneseq
    %v870 = vshrl.u32 %v869, 7
    %v871 = vsub.s32 %v808, %v870
    %v872 = vrot.slane %v790, %v871
    %vm873 = vcmask 1041409
    %v874 = vsel %vm873, %v816, %v812
    %vm875 = vcmask 1042434
    %v876 = vsel %vm875, %v820, %v874
    %vm877 = vcmask 1043459
    %v878 = vsel %vm877, %v824, %v876
    %vm879 = vcmask 1044484
    %v880 = vsel %vm879, %v828, %v878
    %vm881 = vcmask 1045509
    %v882 = vsel %vm881, %v832, %v880
    %vm883 = vcmask 1046534
    %v884 = vsel %vm883, %v836, %v882
    %vm885 = vcmask 1047559
    %v886 = vsel %vm885, %v840, %v884
    %v887 = vsel %vm873, %v848, %v844
    %v888 = vsel %vm875, %v852, %v887
    %v889 = vsel %vm877, %v856, %v888
    %v890 = vsel %vm879, %v860, %v889
    %v891 = vsel %vm881, %v864, %v890
    %v892 = vsel %vm883, %v868, %v891
    %v893 = vsel %vm885, %v872, %v892
    %vm896 = vcmask 64512
    %v897 = vsel %vm896, %v886, -inf
    %898 = vmax.xlane.f32.xlu0 %v897
    %v899 = vpop.xlane.xlu0 %898
    %v900 = vsel %vm896, %v893, -inf
    %901 = vmax.xlane.f32.xlu0 %v900
    %v902 = vpop.xlane.xlu0 %901
    %v905 = vlaneseq
    %v906 = vshrl.u32 %v905, 7
    %v907 = vsub.s32 0, %v906
    %v908 = vrot.slane %v899, %v907
    %v909 = vlaneseq
    %v910 = vshrl.u32 %v909, 7
    %v911 = vsub.s32 1, %v910
    %v912 = vrot.slane %v899, %v911
    %v913 = vlaneseq
    %v914 = vshrl.u32 %v913, 7
    %v915 = vsub.s32 2, %v914
    %v916 = vrot.slane %v899, %v915
    %v917 = vlaneseq
    %v918 = vshrl.u32 %v917, 7
    %v919 = vsub.s32 3, %v918
    %v920 = vrot.slane %v899, %v919
    %v921 = vlaneseq
    %v922 = vshrl.u32 %v921, 7
    %v923 = vsub.s32 4, %v922
    %v924 = vrot.slane %v899, %v923
    %v925 = vlaneseq
    %v926 = vshrl.u32 %v925, 7
    %v927 = vsub.s32 5, %v926
    %v928 = vrot.slane %v899, %v927
    %v929 = vlaneseq
    %v930 = vshrl.u32 %v929, 7
    %v931 = vsub.s32 6, %v930
    %v932 = vrot.slane %v899, %v931
    %v933 = vlaneseq
    %v934 = vshrl.u32 %v933, 7
    %v935 = vsub.s32 7, %v934
    %v936 = vrot.slane %v899, %v935
    %v937 = vlaneseq
    %v938 = vshrl.u32 %v937, 7
    %v939 = vsub.s32 0, %v938
    %v940 = vrot.slane %v902, %v939
    %v941 = vlaneseq
    %v942 = vshrl.u32 %v941, 7
    %v943 = vsub.s32 1, %v942
    %v944 = vrot.slane %v902, %v943
    %v945 = vlaneseq
    %v946 = vshrl.u32 %v945, 7
    %v947 = vsub.s32 2, %v946
    %v948 = vrot.slane %v902, %v947
    %v949 = vlaneseq
    %v950 = vshrl.u32 %v949, 7
    %v951 = vsub.s32 3, %v950
    %v952 = vrot.slane %v902, %v951
    %v953 = vlaneseq
    %v954 = vshrl.u32 %v953, 7
    %v955 = vsub.s32 4, %v954
    %v956 = vrot.slane %v902, %v955
    %v957 = vlaneseq
    %v958 = vshrl.u32 %v957, 7
    %v959 = vsub.s32 5, %v958
    %v960 = vrot.slane %v902, %v959
    %v961 = vlaneseq
    %v962 = vshrl.u32 %v961, 7
    %v963 = vsub.s32 6, %v962
    %v964 = vrot.slane %v902, %v963
    %v965 = vlaneseq
    %v966 = vshrl.u32 %v965, 7
    %v967 = vsub.s32 7, %v966
    %v968 = vrot.slane %v902, %v967
    %v985 = vsub.f32 %v760, %v908
    %v986 = vsub.f32 %v762, %v912
    %v987 = vsub.f32 %v764, %v916
    %v988 = vsub.f32 %v766, %v920
    %v989 = vsub.f32 %v768, %v924
    %v990 = vsub.f32 %v770, %v928
    %v991 = vsub.f32 %v772, %v932
    %v992 = vsub.f32 %v774, %v936
    %v993 = vsub.f32 %v776, %v940
    %v994 = vsub.f32 %v778, %v944
    %v995 = vsub.f32 %v780, %v948
    %v996 = vsub.f32 %v782, %v952
    %v997 = vsub.f32 %v784, %v956
    %v998 = vsub.f32 %v786, %v960
    %v999 = vsub.f32 %v788, %v964
    %v1000 = vsub.f32 %v790, %v968
    %v1001 = vmul.f32 %v985, 1.442695
    %v1002 = vpow.pop %v1001
    %v1003 = vmul.f32 %v986, 1.442695
    %v1004 = vpow.pop %v1003
    %v1005 = vmul.f32 %v987, 1.442695
    %v1006 = vpow.pop %v1005
    %v1007 = vmul.f32 %v988, 1.442695
    %v1008 = vpow.pop %v1007
    %v1009 = vmul.f32 %v989, 1.442695
    %v1010 = vpow.pop %v1009
    %v1011 = vmul.f32 %v990, 1.442695
    %v1012 = vpow.pop %v1011
    %v1013 = vmul.f32 %v991, 1.442695
    %v1014 = vpow.pop %v1013
    %v1015 = vmul.f32 %v992, 1.442695
    %v1016 = vpow.pop %v1015
    %v1017 = vmul.f32 %v993, 1.442695
    %v1018 = vpow.pop %v1017
    %v1019 = vmul.f32 %v994, 1.442695
    %v1020 = vpow.pop %v1019
    %v1021 = vmul.f32 %v995, 1.442695
    %v1022 = vpow.pop %v1021
    %v1023 = vmul.f32 %v996, 1.442695
    %v1024 = vpow.pop %v1023
    %v1025 = vmul.f32 %v997, 1.442695
    %v1026 = vpow.pop %v1025
    %v1027 = vmul.f32 %v998, 1.442695
    %v1028 = vpow.pop %v1027
    %v1029 = vmul.f32 %v999, 1.442695
    %v1030 = vpow.pop %v1029
    %v1031 = vmul.f32 %v1000, 1.442695
    %v1032 = vpow.pop %v1031
    %1049 = vset.pattern.permute.xlu0 0
    %1050 = vperm.xlu0 %1049, %v1002
    %v1051 = vpop.permute.xlu0 %1050
    %1052 = vset.pattern.permute.xlu0 0
    %1053 = vperm.xlu0 %1052, %v1004
    %v1054 = vpop.permute.xlu0 %1053
    %1055 = vset.pattern.permute.xlu0 0
    %1056 = vperm.xlu0 %1055, %v1006
    %v1057 = vpop.permute.xlu0 %1056
    %1058 = vset.pattern.permute.xlu0 0
    %1059 = vperm.xlu0 %1058, %v1008
    %v1060 = vpop.permute.xlu0 %1059
    %1061 = vset.pattern.permute.xlu0 0
    %1062 = vperm.xlu0 %1061, %v1010
    %v1063 = vpop.permute.xlu0 %1062
    %1064 = vset.pattern.permute.xlu0 0
    %1065 = vperm.xlu0 %1064, %v1012
    %v1066 = vpop.permute.xlu0 %1065
    %1067 = vset.pattern.permute.xlu0 0
    %1068 = vperm.xlu0 %1067, %v1014
    %v1069 = vpop.permute.xlu0 %1068
    %1070 = vset.pattern.permute.xlu0 0
    %1071 = vperm.xlu0 %1070, %v1016
    %v1072 = vpop.permute.xlu0 %1071
    %1073 = vset.pattern.permute.xlu0 0
    %1074 = vperm.xlu0 %1073, %v1018
    %v1075 = vpop.permute.xlu0 %1074
    %1076 = vset.pattern.permute.xlu0 0
    %1077 = vperm.xlu0 %1076, %v1020
    %v1078 = vpop.permute.xlu0 %1077
    %1079 = vset.pattern.permute.xlu0 0
    %1080 = vperm.xlu0 %1079, %v1022
    %v1081 = vpop.permute.xlu0 %1080
    %1082 = vset.pattern.permute.xlu0 0
    %1083 = vperm.xlu0 %1082, %v1024
    %v1084 = vpop.permute.xlu0 %1083
    %1085 = vset.pattern.permute.xlu0 0
    %1086 = vperm.xlu0 %1085, %v1026
    %v1087 = vpop.permute.xlu0 %1086
    %1088 = vset.pattern.permute.xlu0 0
    %1089 = vperm.xlu0 %1088, %v1028
    %v1090 = vpop.permute.xlu0 %1089
    %1091 = vset.pattern.permute.xlu0 0
    %1092 = vperm.xlu0 %1091, %v1030
    %v1093 = vpop.permute.xlu0 %1092
    %1094 = vset.pattern.permute.xlu0 0
    %1095 = vperm.xlu0 %1094, %v1032
    %v1096 = vpop.permute.xlu0 %1095
    %v1097 = vlaneseq
    %v1098 = vshrl.u32 %v1097, 7
    %v1099 = vsub.s32 %v808, %v1098
    %v1100 = vrot.slane %v1051, %v1099
    %v1101 = vlaneseq
    %v1102 = vshrl.u32 %v1101, 7
    %v1103 = vsub.s32 %v808, %v1102
    %v1104 = vrot.slane %v1054, %v1103
    %v1105 = vlaneseq
    %v1106 = vshrl.u32 %v1105, 7
    %v1107 = vsub.s32 %v808, %v1106
    %v1108 = vrot.slane %v1057, %v1107
    %v1109 = vlaneseq
    %v1110 = vshrl.u32 %v1109, 7
    %v1111 = vsub.s32 %v808, %v1110
    %v1112 = vrot.slane %v1060, %v1111
    %v1113 = vlaneseq
    %v1114 = vshrl.u32 %v1113, 7
    %v1115 = vsub.s32 %v808, %v1114
    %v1116 = vrot.slane %v1063, %v1115
    %v1117 = vlaneseq
    %v1118 = vshrl.u32 %v1117, 7
    %v1119 = vsub.s32 %v808, %v1118
    %v1120 = vrot.slane %v1066, %v1119
    %v1121 = vlaneseq
    %v1122 = vshrl.u32 %v1121, 7
    %v1123 = vsub.s32 %v808, %v1122
    %v1124 = vrot.slane %v1069, %v1123
    %v1125 = vlaneseq
    %v1126 = vshrl.u32 %v1125, 7
    %v1127 = vsub.s32 %v808, %v1126
    %v1128 = vrot.slane %v1072, %v1127
    %v1129 = vlaneseq
    %v1130 = vshrl.u32 %v1129, 7
    %v1131 = vsub.s32 %v808, %v1130
    %v1132 = vrot.slane %v1075, %v1131
    %v1133 = vlaneseq
    %v1134 = vshrl.u32 %v1133, 7
    %v1135 = vsub.s32 %v808, %v1134
    %v1136 = vrot.slane %v1078, %v1135
    %v1137 = vlaneseq
    %v1138 = vshrl.u32 %v1137, 7
    %v1139 = vsub.s32 %v808, %v1138
    %v1140 = vrot.slane %v1081, %v1139
    %v1141 = vlaneseq
    %v1142 = vshrl.u32 %v1141, 7
    %v1143 = vsub.s32 %v808, %v1142
    %v1144 = vrot.slane %v1084, %v1143
    %v1145 = vlaneseq
    %v1146 = vshrl.u32 %v1145, 7
    %v1147 = vsub.s32 %v808, %v1146
    %v1148 = vrot.slane %v1087, %v1147
    %v1149 = vlaneseq
    %v1150 = vshrl.u32 %v1149, 7
    %v1151 = vsub.s32 %v808, %v1150
    %v1152 = vrot.slane %v1090, %v1151
    %v1153 = vlaneseq
    %v1154 = vshrl.u32 %v1153, 7
    %v1155 = vsub.s32 %v808, %v1154
    %v1156 = vrot.slane %v1093, %v1155
    %v1157 = vlaneseq
    %v1158 = vshrl.u32 %v1157, 7
    %v1159 = vsub.s32 %v808, %v1158
    %v1160 = vrot.slane %v1096, %v1159
    %v1161 = vsel %vm873, %v1104, %v1100
    %v1162 = vsel %vm875, %v1108, %v1161
    %v1163 = vsel %vm877, %v1112, %v1162
    %v1164 = vsel %vm879, %v1116, %v1163
    %v1165 = vsel %vm881, %v1120, %v1164
    %v1166 = vsel %vm883, %v1124, %v1165
    %v1167 = vsel %vm885, %v1128, %v1166
    %v1168 = vsel %vm873, %v1136, %v1132
    %v1169 = vsel %vm875, %v1140, %v1168
    %v1170 = vsel %vm877, %v1144, %v1169
    %v1171 = vsel %vm879, %v1148, %v1170
    %v1172 = vsel %vm881, %v1152, %v1171
    %v1173 = vsel %vm883, %v1156, %v1172
    %v1174 = vsel %vm885, %v1160, %v1173
    %v1177 = vsel %vm896, %v1167, 0.0
    %1178 = vadd.xlane.f32.xlu0 %v1177
    %v1179 = vpop.xlane.xlu0 %1178
    %v1180 = vsel %vm896, %v1174, 0.0
    %1181 = vadd.xlane.f32.xlu0 %v1180
    %v1182 = vpop.xlane.xlu0 %1181
    %v1183 = vrcp.pop %v1179
    %v1184 = vrcp.pop %v1182
    %v1187 = vlaneseq
    %v1188 = vshrl.u32 %v1187, 7
    %v1189 = vsub.s32 0, %v1188
    %v1190 = vrot.slane %v1183, %v1189
    %v1191 = vlaneseq
    %v1192 = vshrl.u32 %v1191, 7
    %v1193 = vsub.s32 1, %v1192
    %v1194 = vrot.slane %v1183, %v1193
    %v1195 = vlaneseq
    %v1196 = vshrl.u32 %v1195, 7
    %v1197 = vsub.s32 2, %v1196
    %v1198 = vrot.slane %v1183, %v1197
    %v1199 = vlaneseq
    %v1200 = vshrl.u32 %v1199, 7
    %v1201 = vsub.s32 3, %v1200
    %v1202 = vrot.slane %v1183, %v1201
    %v1203 = vlaneseq
    %v1204 = vshrl.u32 %v1203, 7
    %v1205 = vsub.s32 4, %v1204
    %v1206 = vrot.slane %v1183, %v1205
    %v1207 = vlaneseq
    %v1208 = vshrl.u32 %v1207, 7
    %v1209 = vsub.s32 5, %v1208
    %v1210 = vrot.slane %v1183, %v1209
    %v1211 = vlaneseq
    %v1212 = vshrl.u32 %v1211, 7
    %v1213 = vsub.s32 6, %v1212
    %v1214 = vrot.slane %v1183, %v1213
    %v1215 = vlaneseq
    %v1216 = vshrl.u32 %v1215, 7
    %v1217 = vsub.s32 7, %v1216
    %v1218 = vrot.slane %v1183, %v1217
    %v1219 = vlaneseq
    %v1220 = vshrl.u32 %v1219, 7
    %v1221 = vsub.s32 0, %v1220
    %v1222 = vrot.slane %v1184, %v1221
    %v1223 = vlaneseq
    %v1224 = vshrl.u32 %v1223, 7
    %v1225 = vsub.s32 1, %v1224
    %v1226 = vrot.slane %v1184, %v1225
    %v1227 = vlaneseq
    %v1228 = vshrl.u32 %v1227, 7
    %v1229 = vsub.s32 2, %v1228
    %v1230 = vrot.slane %v1184, %v1229
    %v1231 = vlaneseq
    %v1232 = vshrl.u32 %v1231, 7
    %v1233 = vsub.s32 3, %v1232
    %v1234 = vrot.slane %v1184, %v1233
    %v1235 = vlaneseq
    %v1236 = vshrl.u32 %v1235, 7
    %v1237 = vsub.s32 4, %v1236
    %v1238 = vrot.slane %v1184, %v1237
    %v1239 = vlaneseq
    %v1240 = vshrl.u32 %v1239, 7
    %v1241 = vsub.s32 5, %v1240
    %v1242 = vrot.slane %v1184, %v1241
    %v1243 = vlaneseq
    %v1244 = vshrl.u32 %v1243, 7
    %v1245 = vsub.s32 6, %v1244
    %v1246 = vrot.slane %v1184, %v1245
    %v1247 = vlaneseq
    %v1248 = vshrl.u32 %v1247, 7
    %v1249 = vsub.s32 7, %v1248
    %v1250 = vrot.slane %v1184, %v1249
    %v1267 = vmul.f32 %v1002, %v1190
    %v1268 = vmul.f32 %v1004, %v1194
    %v1269 = vmul.f32 %v1006, %v1198
    %v1270 = vmul.f32 %v1008, %v1202
    %v1271 = vmul.f32 %v1010, %v1206
    %v1272 = vmul.f32 %v1012, %v1210
    %v1273 = vmul.f32 %v1014, %v1214
    %v1274 = vmul.f32 %v1016, %v1218
    %v1275 = vmul.f32 %v1018, %v1222
    %v1276 = vmul.f32 %v1020, %v1226
    %v1277 = vmul.f32 %v1022, %v1230
    %v1278 = vmul.f32 %v1024, %v1234
    %v1279 = vmul.f32 %v1026, %v1238
    %v1280 = vmul.f32 %v1028, %v1242
    %v1281 = vmul.f32 %v1030, %v1246
    %v1282 = vmul.f32 %v1032, %v1250
    %v1283 = vunpack.c.l.bf16 %v456
    %v1284 = vunpack.c.l.bf16 %v457
    %v1285 = vunpack.c.l.bf16 %v458
    %v1286 = vunpack.c.l.bf16 %v459
    %v1287 = vunpack.c.l.bf16 %v460
    %v1288 = vunpack.c.l.bf16 %v461
    %v1289 = vunpack.c.l.bf16 %v462
    %v1290 = vunpack.c.l.bf16 %v463
    %v1291 = vunpack.c.l.bf16 %v464
    %v1292 = vunpack.c.l.bf16 %v465
    %v1293 = vunpack.c.l.bf16 %v466
    %v1294 = vunpack.c.l.bf16 %v467
    %v1295 = vunpack.c.l.bf16 %v468
    %v1296 = vunpack.c.l.bf16 %v469
    %v1297 = vunpack.c.l.bf16 %v470
    %v1298 = vunpack.c.l.bf16 %v471
    %1300 = vset.pattern.permute.xlu0 0
    %1301 = vperm.xlu0 %1300, %v1267
    %v1302 = vpop.permute.xlu0 %1301
    %1305 = vset.pattern.permute.xlu0 0
    %1306 = vperm.xlu0 %1305, %v1268
    %v1307 = vpop.permute.xlu0 %1306
    %1310 = vset.pattern.permute.xlu0 0
    %1311 = vperm.xlu0 %1310, %v1269
    %v1312 = vpop.permute.xlu0 %1311
    %1315 = vset.pattern.permute.xlu0 0
    %1316 = vperm.xlu0 %1315, %v1270
    %v1317 = vpop.permute.xlu0 %1316
    %1320 = vset.pattern.permute.xlu0 0
    %1321 = vperm.xlu0 %1320, %v1271
    %v1322 = vpop.permute.xlu0 %1321
    %1325 = vset.pattern.permute.xlu0 0
    %1326 = vperm.xlu0 %1325, %v1272
    %v1327 = vpop.permute.xlu0 %1326
    %1330 = vset.pattern.permute.xlu0 0
    %1331 = vperm.xlu0 %1330, %v1273
    %v1332 = vpop.permute.xlu0 %1331
    %1335 = vset.pattern.permute.xlu0 0
    %1336 = vperm.xlu0 %1335, %v1274
    %v1337 = vpop.permute.xlu0 %1336
    %1340 = vset.pattern.permute.xlu0 0
    %1341 = vperm.xlu0 %1340, %v1275
    %v1342 = vpop.permute.xlu0 %1341
    %1345 = vset.pattern.permute.xlu0 0
    %1346 = vperm.xlu0 %1345, %v1276
    %v1347 = vpop.permute.xlu0 %1346
    %1350 = vset.pattern.permute.xlu0 0
    %1351 = vperm.xlu0 %1350, %v1277
    %v1352 = vpop.permute.xlu0 %1351
    %1355 = vset.pattern.permute.xlu0 0
    %1356 = vperm.xlu0 %1355, %v1278
    %v1357 = vpop.permute.xlu0 %1356
    %1360 = vset.pattern.permute.xlu0 0
    %1361 = vperm.xlu0 %1360, %v1279
    %v1362 = vpop.permute.xlu0 %1361
    %1365 = vset.pattern.permute.xlu0 0
    %1366 = vperm.xlu0 %1365, %v1280
    %v1367 = vpop.permute.xlu0 %1366
    %1370 = vset.pattern.permute.xlu0 0
    %1371 = vperm.xlu0 %1370, %v1281
    %v1372 = vpop.permute.xlu0 %1371
    %1375 = vset.pattern.permute.xlu0 0
    %1376 = vperm.xlu0 %1375, %v1282
    %v1377 = vpop.permute.xlu0 %1376
    %v1379 = vmul.f32 %v1302, %v1283
    %v1380 = vmul.f32 %v1307, %v1284
    %v1381 = vmul.f32 %v1312, %v1285
    %v1382 = vmul.f32 %v1317, %v1286
    %v1383 = vmul.f32 %v1322, %v1287
    %v1384 = vmul.f32 %v1327, %v1288
    %v1385 = vmul.f32 %v1332, %v1289
    %v1386 = vmul.f32 %v1337, %v1290
    %v1387 = vmul.f32 %v1342, %v1291
    %v1388 = vmul.f32 %v1347, %v1292
    %v1389 = vmul.f32 %v1352, %v1293
    %v1390 = vmul.f32 %v1357, %v1294
    %v1391 = vmul.f32 %v1362, %v1295
    %v1392 = vmul.f32 %v1367, %v1296
    %v1393 = vmul.f32 %v1372, %v1297
    %v1394 = vmul.f32 %v1377, %v1298
    %v1395 = vadd.f32 %v1379, %v1380
    %v1396 = vadd.f32 %v1395, %v1381
    %v1397 = vadd.f32 %v1396, %v1382
    %v1398 = vadd.f32 %v1397, %v1383
    %v1399 = vadd.f32 %v1398, %v1384
    %v1400 = vadd.f32 %v1399, %v1385
    %v1401 = vadd.f32 %v1400, %v1386
    %v1402 = vadd.f32 %v1401, %v1387
    %v1403 = vadd.f32 %v1402, %v1388
    %v1404 = vadd.f32 %v1403, %v1389
    %v1405 = vadd.f32 %v1404, %v1390
    %v1406 = vadd.f32 %v1405, %v1391
    %v1407 = vadd.f32 %v1406, %v1392
    %v1408 = vadd.f32 %v1407, %v1393
    %v1409 = vadd.f32 %v1408, %v1394
    %v1410 = vld [vmem:[%s0] sm:$0xf]
    %v1411 = vpack.c.bf16 %v1409, %v1409
    %v1412 = vld [vmem:[#allocation5] sm:$0xff]
    %v1413 = vld [vmem:[#allocation5 + $0x8] sm:$0xff]
    %v1414 = vld [vmem:[#allocation5 + $0x10] sm:$0xff]
    %v1415 = vld [vmem:[#allocation5 + $0x18] sm:$0xff]
    %v1416 = vld [vmem:[#allocation5 + $0x20] sm:$0xff]
    %v1417 = vld [vmem:[#allocation5 + $0x28] sm:$0xff]
    %v1418 = vld [vmem:[#allocation5 + $0x30] sm:$0xff]
    %v1419 = vld [vmem:[#allocation5 + $0x38] sm:$0xff]
    %v1420 = vld [vmem:[#allocation5 + $0x40] sm:$0xff]
    %v1421 = vld [vmem:[#allocation5 + $0x48] sm:$0xff]
    %v1422 = vld [vmem:[#allocation5 + $0x50] sm:$0xff]
    %v1423 = vld [vmem:[#allocation5 + $0x58] sm:$0xff]
    %v1424 = vld [vmem:[#allocation5 + $0x60] sm:$0xff]
    %v1425 = vld [vmem:[#allocation5 + $0x68] sm:$0xff]
    %v1426 = vld [vmem:[#allocation5 + $0x70] sm:$0xff]
    %v1427 = vld [vmem:[#allocation5 + $0x78] sm:$0xff]
    %v1428 = vld [vmem:[#allocation5 + $0x80] sm:$0xff]
    %v1429 = vld [vmem:[#allocation5 + $0x88] sm:$0xff]
    %v1430 = vld [vmem:[#allocation5 + $0x90] sm:$0xff]
    %v1431 = vld [vmem:[#allocation5 + $0x98] sm:$0xff]
    %v1432 = vld [vmem:[#allocation5 + $0xa0] sm:$0xff]
    %v1433 = vld [vmem:[#allocation5 + $0xa8] sm:$0xff]
    %v1434 = vld [vmem:[#allocation5 + $0xb0] sm:$0xff]
    %v1435 = vld [vmem:[#allocation5 + $0xb8] sm:$0xff]
    %v1436 = vld [vmem:[#allocation5 + $0xc0] sm:$0xff]
    %v1437 = vld [vmem:[#allocation5 + $0xc8] sm:$0xff]
    %v1438 = vld [vmem:[#allocation5 + $0xd0] sm:$0xff]
    %v1439 = vld [vmem:[#allocation5 + $0xd8] sm:$0xff]
    %v1440 = vld [vmem:[#allocation5 + $0xe0] sm:$0xff]
    %v1441 = vld [vmem:[#allocation5 + $0xe8] sm:$0xff]
    %v1442 = vld [vmem:[#allocation5 + $0xf0] sm:$0xff]
    %v1443 = vld [vmem:[#allocation5 + $0xf8] sm:$0xff]
    %v1444 = vld [vmem:[#allocation5 + $0x100] sm:$0xff]
    %v1445 = vld [vmem:[#allocation5 + $0x108] sm:$0xff]
    %v1446 = vld [vmem:[#allocation5 + $0x110] sm:$0xff]
    %v1447 = vld [vmem:[#allocation5 + $0x118] sm:$0xff]
    %v1448 = vld [vmem:[#allocation5 + $0x120] sm:$0xff]
    %v1449 = vld [vmem:[#allocation5 + $0x128] sm:$0xff]
    %v1450 = vld [vmem:[#allocation5 + $0x130] sm:$0xff]
    %v1451 = vld [vmem:[#allocation5 + $0x138] sm:$0xff]
    %v1452 = vld [vmem:[#allocation5 + $0x140] sm:$0xff]
    %v1453 = vld [vmem:[#allocation5 + $0x148] sm:$0xff]
    %v1454 = vld [vmem:[#allocation5 + $0x150] sm:$0xff]
    %v1455 = vld [vmem:[#allocation5 + $0x158] sm:$0xff]
    %v1456 = vld [vmem:[#allocation5 + $0x160] sm:$0xff]
    %v1457 = vld [vmem:[#allocation5 + $0x168] sm:$0xff]
    %v1458 = vld [vmem:[#allocation5 + $0x170] sm:$0xff]
    %v1459 = vld [vmem:[#allocation5 + $0x178] sm:$0xff]
    %v1460 = vld [vmem:[#allocation5 + $0x180] sm:$0xff]
    %v1461 = vld [vmem:[#allocation5 + $0x188] sm:$0xff]
    %v1462 = vld [vmem:[#allocation5 + $0x190] sm:$0xff]
    %v1463 = vld [vmem:[#allocation5 + $0x198] sm:$0xff]
    %v1464 = vld [vmem:[#allocation5 + $0x1a0] sm:$0xff]
    %v1465 = vld [vmem:[#allocation5 + $0x1a8] sm:$0xff]
    %v1466 = vld [vmem:[#allocation5 + $0x1b0] sm:$0xff]
    %v1467 = vld [vmem:[#allocation5 + $0x1b8] sm:$0xff]
    %v1468 = vld [vmem:[#allocation5 + $0x1c0] sm:$0xff]
    %v1469 = vld [vmem:[#allocation5 + $0x1c8] sm:$0xff]
    %v1470 = vld [vmem:[#allocation5 + $0x1d0] sm:$0xff]
    %v1471 = vld [vmem:[#allocation5 + $0x1d8] sm:$0xff]
    %v1472 = vld [vmem:[#allocation5 + $0x1e0] sm:$0xff]
    %v1473 = vld [vmem:[#allocation5 + $0x1e8] sm:$0xff]
    %v1474 = vld [vmem:[#allocation5 + $0x1f0] sm:$0xff]
    %v1475 = vld [vmem:[#allocation5 + $0x1f8] sm:$0xff]
    %v1540 = vunpack.c.l.b16 %v1412
    %v1541 = vunpack.c.h.b16 %v1412
    %v1542 = vunpack.c.l.b16 %v1413
    %v1543 = vunpack.c.h.b16 %v1413
    %v1544 = vunpack.c.l.b16 %v1414
    %v1545 = vunpack.c.h.b16 %v1414
    %v1546 = vunpack.c.l.b16 %v1415
    %v1547 = vunpack.c.h.b16 %v1415
    %v1548 = vunpack.c.l.b16 %v1416
    %v1549 = vunpack.c.h.b16 %v1416
    %v1550 = vunpack.c.l.b16 %v1417
    %v1551 = vunpack.c.h.b16 %v1417
    %v1552 = vunpack.c.l.b16 %v1418
    %v1553 = vunpack.c.h.b16 %v1418
    %v1554 = vunpack.c.l.b16 %v1419
    %v1555 = vunpack.c.h.b16 %v1419
    %v1556 = vunpack.c.l.b16 %v1420
    %v1557 = vunpack.c.h.b16 %v1420
    %v1558 = vunpack.c.l.b16 %v1421
    %v1559 = vunpack.c.h.b16 %v1421
    %v1560 = vunpack.c.l.b16 %v1422
    %v1561 = vunpack.c.h.b16 %v1422
    %v1562 = vunpack.c.l.b16 %v1423
    %v1563 = vunpack.c.h.b16 %v1423
    %v1564 = vunpack.c.l.b16 %v1424
    %v1565 = vunpack.c.h.b16 %v1424
    %v1566 = vunpack.c.l.b16 %v1425
    %v1567 = vunpack.c.h.b16 %v1425
    %v1568 = vunpack.c.l.b16 %v1426
    %v1569 = vunpack.c.h.b16 %v1426
    %v1570 = vunpack.c.l.b16 %v1427
    %v1571 = vunpack.c.h.b16 %v1427
    %v1572 = vunpack.c.l.b16 %v1428
    %v1573 = vunpack.c.h.b16 %v1428
    %v1574 = vunpack.c.l.b16 %v1429
    %v1575 = vunpack.c.h.b16 %v1429
    %v1576 = vunpack.c.l.b16 %v1430
    %v1577 = vunpack.c.h.b16 %v1430
    %v1578 = vunpack.c.l.b16 %v1431
    %v1579 = vunpack.c.h.b16 %v1431
    %v1580 = vunpack.c.l.b16 %v1432
    %v1581 = vunpack.c.h.b16 %v1432
    %v1582 = vunpack.c.l.b16 %v1433
    %v1583 = vunpack.c.h.b16 %v1433
    %v1584 = vunpack.c.l.b16 %v1434
    %v1585 = vunpack.c.h.b16 %v1434
    %v1586 = vunpack.c.l.b16 %v1435
    %v1587 = vunpack.c.h.b16 %v1435
    %v1588 = vunpack.c.l.b16 %v1436
    %v1589 = vunpack.c.h.b16 %v1436
    %v1590 = vunpack.c.l.b16 %v1437
    %v1591 = vunpack.c.h.b16 %v1437
    %v1592 = vunpack.c.l.b16 %v1438
    %v1593 = vunpack.c.h.b16 %v1438
    %v1594 = vunpack.c.l.b16 %v1439
    %v1595 = vunpack.c.h.b16 %v1439
    %v1596 = vunpack.c.l.b16 %v1440
    %v1597 = vunpack.c.h.b16 %v1440
    %v1598 = vunpack.c.l.b16 %v1441
    %v1599 = vunpack.c.h.b16 %v1441
    %v1600 = vunpack.c.l.b16 %v1442
    %v1601 = vunpack.c.h.b16 %v1442
    %v1602 = vunpack.c.l.b16 %v1443
    %v1603 = vunpack.c.h.b16 %v1443
    %v1604 = vunpack.c.l.b16 %v1444
    %v1605 = vunpack.c.h.b16 %v1444
    %v1606 = vunpack.c.l.b16 %v1445
    %v1607 = vunpack.c.h.b16 %v1445
    %v1608 = vunpack.c.l.b16 %v1446
    %v1609 = vunpack.c.h.b16 %v1446
    %v1610 = vunpack.c.l.b16 %v1447
    %v1611 = vunpack.c.h.b16 %v1447
    %v1612 = vunpack.c.l.b16 %v1448
    %v1613 = vunpack.c.h.b16 %v1448
    %v1614 = vunpack.c.l.b16 %v1449
    %v1615 = vunpack.c.h.b16 %v1449
    %v1616 = vunpack.c.l.b16 %v1450
    %v1617 = vunpack.c.h.b16 %v1450
    %v1618 = vunpack.c.l.b16 %v1451
    %v1619 = vunpack.c.h.b16 %v1451
    %v1620 = vunpack.c.l.b16 %v1452
    %v1621 = vunpack.c.h.b16 %v1452
    %v1622 = vunpack.c.l.b16 %v1453
    %v1623 = vunpack.c.h.b16 %v1453
    %v1624 = vunpack.c.l.b16 %v1454
    %v1625 = vunpack.c.h.b16 %v1454
    %v1626 = vunpack.c.l.b16 %v1455
    %v1627 = vunpack.c.h.b16 %v1455
    %v1628 = vunpack.c.l.b16 %v1456
    %v1629 = vunpack.c.h.b16 %v1456
    %v1630 = vunpack.c.l.b16 %v1457
    %v1631 = vunpack.c.h.b16 %v1457
    %v1632 = vunpack.c.l.b16 %v1458
    %v1633 = vunpack.c.h.b16 %v1458
    %v1634 = vunpack.c.l.b16 %v1459
    %v1635 = vunpack.c.h.b16 %v1459
    %v1636 = vunpack.c.l.b16 %v1460
    %v1637 = vunpack.c.h.b16 %v1460
    %v1638 = vunpack.c.l.b16 %v1461
    %v1639 = vunpack.c.h.b16 %v1461
    %v1640 = vunpack.c.l.b16 %v1462
    %v1641 = vunpack.c.h.b16 %v1462
    %v1642 = vunpack.c.l.b16 %v1463
    %v1643 = vunpack.c.h.b16 %v1463
    %v1644 = vunpack.c.l.b16 %v1464
    %v1645 = vunpack.c.h.b16 %v1464
    %v1646 = vunpack.c.l.b16 %v1465
    %v1647 = vunpack.c.h.b16 %v1465
    %v1648 = vunpack.c.l.b16 %v1466
    %v1649 = vunpack.c.h.b16 %v1466
    %v1650 = vunpack.c.l.b16 %v1467
    %v1651 = vunpack.c.h.b16 %v1467
    %v1652 = vunpack.c.l.b16 %v1468
    %v1653 = vunpack.c.h.b16 %v1468
    %v1654 = vunpack.c.l.b16 %v1469
    %v1655 = vunpack.c.h.b16 %v1469
    %v1656 = vunpack.c.l.b16 %v1470
    %v1657 = vunpack.c.h.b16 %v1470
    %v1658 = vunpack.c.l.b16 %v1471
    %v1659 = vunpack.c.h.b16 %v1471
    %v1660 = vunpack.c.l.b16 %v1472
    %v1661 = vunpack.c.h.b16 %v1472
    %v1662 = vunpack.c.l.b16 %v1473
    %v1663 = vunpack.c.h.b16 %v1473
    %v1664 = vunpack.c.l.b16 %v1474
    %v1665 = vunpack.c.h.b16 %v1474
    %v1666 = vunpack.c.l.b16 %v1475
    %v1667 = vunpack.c.h.b16 %v1475
    %v1668 = vpack.c.b16 %v1544, %v1540
    %v1669 = vpack.c.b16 %v1545, %v1541
    %v1670 = vpack.c.b16 %v1546, %v1542
    %v1671 = vpack.c.b16 %v1547, %v1543
    %v1672 = vpack.c.b16 %v1552, %v1548
    %v1673 = vpack.c.b16 %v1553, %v1549
    %v1674 = vpack.c.b16 %v1554, %v1550
    %v1675 = vpack.c.b16 %v1555, %v1551
    %v1676 = vpack.c.b16 %v1560, %v1556
    %v1677 = vpack.c.b16 %v1561, %v1557
    %v1678 = vpack.c.b16 %v1562, %v1558
    %v1679 = vpack.c.b16 %v1563, %v1559
    %v1680 = vpack.c.b16 %v1568, %v1564
    %v1681 = vpack.c.b16 %v1569, %v1565
    %v1682 = vpack.c.b16 %v1570, %v1566
    %v1683 = vpack.c.b16 %v1571, %v1567
    %v1684 = vpack.c.b16 %v1576, %v1572
    %v1685 = vpack.c.b16 %v1577, %v1573
    %v1686 = vpack.c.b16 %v1578, %v1574
    %v1687 = vpack.c.b16 %v1579, %v1575
    %v1688 = vpack.c.b16 %v1584, %v1580
    %v1689 = vpack.c.b16 %v1585, %v1581
    %v1690 = vpack.c.b16 %v1586, %v1582
    %v1691 = vpack.c.b16 %v1587, %v1583
    %v1692 = vpack.c.b16 %v1592, %v1588
    %v1693 = vpack.c.b16 %v1593, %v1589
    %v1694 = vpack.c.b16 %v1594, %v1590
    %v1695 = vpack.c.b16 %v1595, %v1591
    %v1696 = vpack.c.b16 %v1600, %v1596
    %v1697 = vpack.c.b16 %v1601, %v1597
    %v1698 = vpack.c.b16 %v1602, %v1598
    %v1699 = vpack.c.b16 %v1603, %v1599
    %v1700 = vpack.c.b16 %v1608, %v1604
    %v1701 = vpack.c.b16 %v1609, %v1605
    %v1702 = vpack.c.b16 %v1610, %v1606
    %v1703 = vpack.c.b16 %v1611, %v1607
    %v1704 = vpack.c.b16 %v1616, %v1612
    %v1705 = vpack.c.b16 %v1617, %v1613
    %v1706 = vpack.c.b16 %v1618, %v1614
    %v1707 = vpack.c.b16 %v1619, %v1615
    %v1708 = vpack.c.b16 %v1624, %v1620
    %v1709 = vpack.c.b16 %v1625, %v1621
    %v1710 = vpack.c.b16 %v1626, %v1622
    %v1711 = vpack.c.b16 %v1627, %v1623
    %v1712 = vpack.c.b16 %v1632, %v1628
    %v1713 = vpack.c.b16 %v1633, %v1629
    %v1714 = vpack.c.b16 %v1634, %v1630
    %v1715 = vpack.c.b16 %v1635, %v1631
    %v1716 = vpack.c.b16 %v1640, %v1636
    %v1717 = vpack.c.b16 %v1641, %v1637
    %v1718 = vpack.c.b16 %v1642, %v1638
    %v1719 = vpack.c.b16 %v1643, %v1639
    %v1720 = vpack.c.b16 %v1648, %v1644
    %v1721 = vpack.c.b16 %v1649, %v1645
    %v1722 = vpack.c.b16 %v1650, %v1646
    %v1723 = vpack.c.b16 %v1651, %v1647
    %v1724 = vpack.c.b16 %v1656, %v1652
    %v1725 = vpack.c.b16 %v1657, %v1653
    %v1726 = vpack.c.b16 %v1658, %v1654
    %v1727 = vpack.c.b16 %v1659, %v1655
    %v1728 = vpack.c.b16 %v1664, %v1660
    %v1729 = vpack.c.b16 %v1665, %v1661
    %v1730 = vpack.c.b16 %v1666, %v1662
    %v1731 = vpack.c.b16 %v1667, %v1663
    %1796 = vmatprep.subr.bf16.mxu0 %v1669
    %1797 = vmatpush1.bf16.msra.mxu0 %v1668
    %1798 = vmatprep.subr.bf16.mxu0 %v1673
    %1799 = vmatpush1.bf16.msra.mxu0 %v1672
    %1800 = vmatprep.subr.bf16.mxu0 %v1677
    %1801 = vmatpush1.bf16.msra.mxu0 %v1676
    %1802 = vmatprep.subr.bf16.mxu0 %v1681
    %1803 = vmatpush1.bf16.msra.mxu0 %v1680
    %1804 = vmatprep.subr.bf16.mxu0 %v1685
    %1805 = vmatpush1.bf16.msra.mxu0 %v1684
    %1806 = vmatprep.subr.bf16.mxu0 %v1689
    %1807 = vmatpush1.bf16.msra.mxu0 %v1688
    %1808 = vmatprep.subr.bf16.mxu0 %v1693
    %1809 = vmatpush1.bf16.msra.mxu0 %v1692
    %1810 = vmatprep.subr.bf16.mxu0 %v1697
    %1811 = vmatpush1.bf16.msra.mxu0 %v1696
    %1812 = vmatprep.subr.bf16.mxu0 %v1701
    %1813 = vmatpush1.bf16.msra.mxu0 %v1700
    %1814 = vmatprep.subr.bf16.mxu0 %v1705
    %1815 = vmatpush1.bf16.msra.mxu0 %v1704
    %1816 = vmatprep.subr.bf16.mxu0 %v1709
    %1817 = vmatpush1.bf16.msra.mxu0 %v1708
    %1818 = vmatprep.subr.bf16.mxu0 %v1713
    %1819 = vmatpush1.bf16.msra.mxu0 %v1712
    %1820 = vmatprep.subr.bf16.mxu0 %v1717
    %1821 = vmatpush1.bf16.msra.mxu0 %v1716
    %1822 = vmatprep.subr.bf16.mxu0 %v1721
    %1823 = vmatpush1.bf16.msra.mxu0 %v1720
    %1824 = vmatprep.subr.bf16.mxu0 %v1725
    %1825 = vmatpush1.bf16.msra.mxu0 %v1724
    %1826 = vmatprep.subr.bf16.mxu0 %v1729
    %1827 = vmatpush1.bf16.msra.mxu0 %v1728
    %1828 = vmatprep.mubr.bf16.mxu0 %v1411
    %1829 = vmatmul.mubr.bf16.gmra.mrb[0].mxu0 %v1410
    %v1830 = vpop.f32.mrb[0].mxu0
    %v1831 = vadd.f32 %v371, %v1830
    %v1832 = vpop.f32.mrb[0].mxu0
    %v1833 = vadd.f32 %v410, %v1832
    %v1834 = vpop.f32.mrb[0].mxu0
    %v1835 = vpop.f32.mrb[0].mxu0
    %1836 = vdwg.mxu0
    %1837 = vmatprep.subr.bf16.mxu0 %v1671
    %1838 = vmatpush1.bf16.msra.mxu0 %v1670
    %1839 = vmatprep.subr.bf16.mxu0 %v1675
    %1840 = vmatpush1.bf16.msra.mxu0 %v1674
    %1841 = vmatprep.subr.bf16.mxu0 %v1679
    %1842 = vmatpush1.bf16.msra.mxu0 %v1678
    %1843 = vmatprep.subr.bf16.mxu0 %v1683
    %1844 = vmatpush1.bf16.msra.mxu0 %v1682
    %1845 = vmatprep.subr.bf16.mxu0 %v1687
    %1846 = vmatpush1.bf16.msra.mxu0 %v1686
    %1847 = vmatprep.subr.bf16.mxu0 %v1691
    %1848 = vmatpush1.bf16.msra.mxu0 %v1690
    %1849 = vmatprep.subr.bf16.mxu0 %v1695
    %1850 = vmatpush1.bf16.msra.mxu0 %v1694
    %1851 = vmatprep.subr.bf16.mxu0 %v1699
    %1852 = vmatpush1.bf16.msra.mxu0 %v1698
    %1853 = vmatprep.subr.bf16.mxu0 %v1703
    %1854 = vmatpush1.bf16.msra.mxu0 %v1702
    %1855 = vmatprep.subr.bf16.mxu0 %v1707
    %1856 = vmatpush1.bf16.msra.mxu0 %v1706
    %1857 = vmatprep.subr.bf16.mxu0 %v1711
    %1858 = vmatpush1.bf16.msra.mxu0 %v1710
    %1859 = vmatprep.subr.bf16.mxu0 %v1715
    %1860 = vmatpush1.bf16.msra.mxu0 %v1714
    %1861 = vmatprep.subr.bf16.mxu0 %v1719
    %1862 = vmatpush1.bf16.msra.mxu0 %v1718
    %1863 = vmatprep.subr.bf16.mxu0 %v1723
    %1864 = vmatpush1.bf16.msra.mxu0 %v1722
    %1865 = vmatprep.subr.bf16.mxu0 %v1727
    %1866 = vmatpush1.bf16.msra.mxu0 %v1726
    %1867 = vmatprep.subr.bf16.mxu0 %v1731
    %1868 = vmatpush1.bf16.msra.mxu0 %v1730
    %1869 = vmatprep.mubr.bf16.mxu0 %v1411
    %1870 = vmatmul.mubr.bf16.gmra.mrb[0].mxu0 %v1410
    %v1871 = vpop.f32.mrb[0].mxu0
    %v1872 = vadd.f32 %v412, %v1871
    %v1873 = vpop.f32.mrb[0].mxu0
    %v1874 = vadd.f32 %v451, %v1873
    %v1875 = vpop.f32.mrb[0].mxu0
    %v1876 = vpop.f32.mrb[0].mxu0
    %1877 = vdwg.mxu0
    %v1878 = vld [vmem:[%s9] sm:$0xf]
    %v1880 = vlaneseq
    %v1881 = vshrl.u32 %v1880, 7
    %v1882 = vsub.s32 0, %v1881
    %v1883 = vrot.slane %v1878, %v1882
    %v1884 = vlaneseq
    %v1885 = vshrl.u32 %v1884, 7
    %v1886 = vsub.s32 1, %v1885
    %v1887 = vrot.slane %v1878, %v1886
    %v1888 = vlaneseq
    %v1889 = vshrl.u32 %v1888, 7
    %v1890 = vsub.s32 2, %v1889
    %v1891 = vrot.slane %v1878, %v1890
    %v1892 = vlaneseq
    %v1893 = vshrl.u32 %v1892, 7
    %v1894 = vsub.s32 3, %v1893
    %v1895 = vrot.slane %v1878, %v1894
    %v1900 = vadd.f32 %v1831, %v1883
    %v1901 = vadd.f32 %v1833, %v1887
    %v1902 = vadd.f32 %v1872, %v1891
    %v1903 = vadd.f32 %v1874, %v1895
    %v1904 = vxor.u32 %v1900, 2147483648
    %v1905 = vmul.f32 %v1904, 1.442695
    %v1906 = vpow.pop %v1905
    %v1907 = vadd.f32 %v1906, 1.0
    %v1908 = vrcp.pop %v1907
    %v1909 = vmul.f32 1.0, %v1908
    %v1910 = vxor.u32 %v1901, 2147483648
    %v1911 = vmul.f32 %v1910, 1.442695
    %v1912 = vpow.pop %v1911
    %v1913 = vadd.f32 %v1912, 1.0
    %v1914 = vrcp.pop %v1913
    %v1915 = vmul.f32 1.0, %v1914
    %v1916 = vtanh.pop %v1902
    %v1917 = vxor.u32 %v1903, 2147483648
    %v1918 = vmul.f32 %v1917, 1.442695
    %v1919 = vpow.pop %v1918
    %v1920 = vadd.f32 %v1919, 1.0
    %v1921 = vrcp.pop %v1920
    %v1922 = vmul.f32 1.0, %v1921
    %v1923 = vmul.f32 %v1915, %v76
    %v1924 = vmul.f32 %v1909, %v1916
    %v1925 = vadd.f32 %v1923, %v1924
    %v1926 = vtanh.pop %v1925
    %v1927 = vmul.f32 %v1922, %v1926
    %v1928 = vpack.c.bf16 %v1927, %v1927
    %v1929 = vld [vmem:[%s10] sm:$0xff]
    %v1930 = vld [vmem:[%s10 + $0x8] sm:$0xf]
    %v1931 = vld [vmem:[%s10 + $0xc] sm:$0xff]
    %v1932 = vld [vmem:[%s10 + $0x14] sm:$0xf]
    %v1933 = vld [vmem:[%s10 + $0x18] sm:$0xff]
    %v1934 = vld [vmem:[%s10 + $0x20] sm:$0xf]
    %v1935 = vld [vmem:[%s10 + $0x24] sm:$0xff]
    %v1936 = vld [vmem:[%s10 + $0x2c] sm:$0xf]
    %v1937 = vld [vmem:[%s10 + $0x30] sm:$0xff]
    %v1938 = vld [vmem:[%s10 + $0x38] sm:$0xf]
    %v1939 = vld [vmem:[%s10 + $0x3c] sm:$0xff]
    %v1940 = vld [vmem:[%s10 + $0x44] sm:$0xf]
    %v1941 = vld [vmem:[%s10 + $0x48] sm:$0xff]
    %v1942 = vld [vmem:[%s10 + $0x50] sm:$0xf]
    %v1943 = vld [vmem:[%s10 + $0x54] sm:$0xff]
    %v1944 = vld [vmem:[%s10 + $0x5c] sm:$0xf]
    %v1945 = vld [vmem:[%s10 + $0x60] sm:$0xff]
    %v1946 = vld [vmem:[%s10 + $0x68] sm:$0xf]
    %v1947 = vld [vmem:[%s10 + $0x6c] sm:$0xff]
    %v1948 = vld [vmem:[%s10 + $0x74] sm:$0xf]
    %v1949 = vld [vmem:[%s10 + $0x78] sm:$0xff]
    %v1950 = vld [vmem:[%s10 + $0x80] sm:$0xf]
    %v1951 = vld [vmem:[%s10 + $0x84] sm:$0xff]
    %v1952 = vld [vmem:[%s10 + $0x8c] sm:$0xf]
    %v1953 = vld [vmem:[%s10 + $0x90] sm:$0xff]
    %v1954 = vld [vmem:[%s10 + $0x98] sm:$0xf]
    %v1955 = vld [vmem:[%s10 + $0x9c] sm:$0xff]
    %v1956 = vld [vmem:[%s10 + $0xa4] sm:$0xf]
    %v1957 = vld [vmem:[%s10 + $0xa8] sm:$0xff]
    %v1958 = vld [vmem:[%s10 + $0xb0] sm:$0xf]
    %v1959 = vld [vmem:[%s10 + $0xb4] sm:$0xff]
    %v1960 = vld [vmem:[%s10 + $0xbc] sm:$0xf]
    %v1961 = vld [vmem:[%s11] sm:$0x7]
    %v1963 = vlaneseq
    %v1964 = vshrl.u32 %v1963, 7
    %v1965 = vsub.s32 0, %v1964
    %v1966 = vrot.slane %v1961, %v1965
    %v1967 = vlaneseq
    %v1968 = vshrl.u32 %v1967, 7
    %v1969 = vsub.s32 1, %v1968
    %v1970 = vrot.slane %v1961, %v1969
    %v1971 = vlaneseq
    %v1972 = vshrl.u32 %v1971, 7
    %v1973 = vsub.s32 2, %v1972
    %v1974 = vrot.slane %v1961, %v1973
    %v2010 = vunpack.c.l.b16 %v1929
    %v2011 = vunpack.c.h.b16 %v1929
    %v2012 = vunpack.c.l.b16 %v1930
    %v2013 = vunpack.c.l.b16 %v1931
    %v2014 = vunpack.c.h.b16 %v1931
    %v2015 = vunpack.c.l.b16 %v1932
    %v2016 = vunpack.c.l.b16 %v1933
    %v2017 = vunpack.c.h.b16 %v1933
    %v2018 = vunpack.c.l.b16 %v1934
    %v2019 = vunpack.c.l.b16 %v1935
    %v2020 = vunpack.c.h.b16 %v1935
    %v2021 = vunpack.c.l.b16 %v1936
    %v2022 = vunpack.c.l.b16 %v1937
    %v2023 = vunpack.c.h.b16 %v1937
    %v2024 = vunpack.c.l.b16 %v1938
    %v2025 = vunpack.c.l.b16 %v1939
    %v2026 = vunpack.c.h.b16 %v1939
    %v2027 = vunpack.c.l.b16 %v1940
    %v2028 = vunpack.c.l.b16 %v1941
    %v2029 = vunpack.c.h.b16 %v1941
    %v2030 = vunpack.c.l.b16 %v1942
    %v2031 = vunpack.c.l.b16 %v1943
    %v2032 = vunpack.c.h.b16 %v1943
    %v2033 = vunpack.c.l.b16 %v1944
    %v2034 = vunpack.c.l.b16 %v1945
    %v2035 = vunpack.c.h.b16 %v1945
    %v2036 = vunpack.c.l.b16 %v1946
    %v2037 = vunpack.c.l.b16 %v1947
    %v2038 = vunpack.c.h.b16 %v1947
    %v2039 = vunpack.c.l.b16 %v1948
    %v2040 = vunpack.c.l.b16 %v1949
    %v2041 = vunpack.c.h.b16 %v1949
    %v2042 = vunpack.c.l.b16 %v1950
    %v2043 = vunpack.c.l.b16 %v1951
    %v2044 = vunpack.c.h.b16 %v1951
    %v2045 = vunpack.c.l.b16 %v1952
    %v2046 = vunpack.c.l.b16 %v1953
    %v2047 = vunpack.c.h.b16 %v1953
    %v2048 = vunpack.c.l.b16 %v1954
    %v2049 = vunpack.c.l.b16 %v1955
    %v2050 = vunpack.c.h.b16 %v1955
    %v2051 = vunpack.c.l.b16 %v1956
    %v2052 = vunpack.c.l.b16 %v1957
    %v2053 = vunpack.c.h.b16 %v1957
    %v2054 = vunpack.c.l.b16 %v1958
    %v2055 = vunpack.c.l.b16 %v1959
    %v2056 = vunpack.c.h.b16 %v1959
    %v2057 = vunpack.c.l.b16 %v1960
    %v2058 = vpack.c.b16 %v2013, %v2010
    %v2059 = vpack.c.b16 %v2014, %v2011
    %v2060 = vpack.c.b16 %v2015, %v2012
    %v2061 = vpack.c.b16 %v2019, %v2016
    %v2062 = vpack.c.b16 %v2020, %v2017
    %v2063 = vpack.c.b16 %v2021, %v2018
    %v2064 = vpack.c.b16 %v2025, %v2022
    %v2065 = vpack.c.b16 %v2026, %v2023
    %v2066 = vpack.c.b16 %v2027, %v2024
    %v2067 = vpack.c.b16 %v2031, %v2028
    %v2068 = vpack.c.b16 %v2032, %v2029
    %v2069 = vpack.c.b16 %v2033, %v2030
    %v2070 = vpack.c.b16 %v2037, %v2034
    %v2071 = vpack.c.b16 %v2038, %v2035
    %v2072 = vpack.c.b16 %v2039, %v2036
    %v2073 = vpack.c.b16 %v2043, %v2040
    %v2074 = vpack.c.b16 %v2044, %v2041
    %v2075 = vpack.c.b16 %v2045, %v2042
    %v2076 = vpack.c.b16 %v2049, %v2046
    %v2077 = vpack.c.b16 %v2050, %v2047
    %v2078 = vpack.c.b16 %v2051, %v2048
    %v2079 = vpack.c.b16 %v2055, %v2052
    %v2080 = vpack.c.b16 %v2056, %v2053
    %v2081 = vpack.c.b16 %v2057, %v2054
    %2106 = vmatprep.subr.bf16.mxu0 %v2059
    %2107 = vmatpush1.bf16.msra.mxu0 %v2058
    %2108 = vmatprep.subr.bf16.mxu0 %v2062
    %2109 = vmatpush1.bf16.msra.mxu0 %v2061
    %2110 = vmatprep.subr.bf16.mxu0 %v2065
    %2111 = vmatpush1.bf16.msra.mxu0 %v2064
    %2112 = vmatprep.subr.bf16.mxu0 %v2068
    %2113 = vmatpush1.bf16.msra.mxu0 %v2067
    %2114 = vmatprep.subr.bf16.mxu0 %v2071
    %2115 = vmatpush1.bf16.msra.mxu0 %v2070
    %2116 = vmatprep.subr.bf16.mxu0 %v2074
    %2117 = vmatpush1.bf16.msra.mxu0 %v2073
    %2118 = vmatprep.subr.bf16.mxu0 %v2077
    %2119 = vmatpush1.bf16.msra.mxu0 %v2076
    %2120 = vmatprep.subr.bf16.mxu0 %v2080
    %2121 = vmatpush1.bf16.msra.mxu0 %v2079
    %2122 = vmatprep.subr.bf16.mxu0 0
    %2123 = vmatpush1.bf16.msra.mxu0 0
    %2124 = vmatprep.subr.bf16.mxu0 0
    %2125 = vmatpush1.bf16.msra.mxu0 0
    %2126 = vmatprep.subr.bf16.mxu0 0
    %2127 = vmatpush1.bf16.msra.mxu0 0
    %2128 = vmatprep.subr.bf16.mxu0 0
    %2129 = vmatpush1.bf16.msra.mxu0 0
    %2130 = vmatprep.subr.bf16.mxu0 0
    %2131 = vmatpush1.bf16.msra.mxu0 0
    %2132 = vmatprep.subr.bf16.mxu0 0
    %2133 = vmatpush1.bf16.msra.mxu0 0
    %2134 = vmatprep.subr.bf16.mxu0 0
    %2135 = vmatpush1.bf16.msra.mxu0 0
    %2136 = vmatprep.subr.bf16.mxu0 0
    %2137 = vmatpush1.bf16.msra.mxu0 0
    %2138 = vmatprep.mubr.bf16.mxu0 0
    %2139 = vmatmul.mubr.bf16.gmra.mrb[0].mxu0 %v1928
    %v2140 = vpop.f32.mrb[0].mxu0
    %v2141 = vadd.f32 %v1966, %v2140
    %v2142 = vpop.f32.mrb[0].mxu0
    %v2143 = vadd.f32 %v1970, %v2142
    %v2144 = vpop.f32.mrb[0].mxu0
    %v2145 = vpop.f32.mrb[0].mxu0
    %2146 = vdwg.mxu0
    %2147 = vmatprep.subr.bf16.mxu0 0
    %2148 = vmatpush1.bf16.msra.mxu0 %v2060
    %2149 = vmatprep.subr.bf16.mxu0 0
    %2150 = vmatpush1.bf16.msra.mxu0 %v2063
    %2151 = vmatprep.subr.bf16.mxu0 0
    %2152 = vmatpush1.bf16.msra.mxu0 %v2066
    %2153 = vmatprep.subr.bf16.mxu0 0
    %2154 = vmatpush1.bf16.msra.mxu0 %v2069
    %2155 = vmatprep.subr.bf16.mxu0 0
    %2156 = vmatpush1.bf16.msra.mxu0 %v2072
    %2157 = vmatprep.subr.bf16.mxu0 0
    %2158 = vmatpush1.bf16.msra.mxu0 %v2075
    %2159 = vmatprep.subr.bf16.mxu0 0
    %2160 = vmatpush1.bf16.msra.mxu0 %v2078
    %2161 = vmatprep.subr.bf16.mxu0 0
    %2162 = vmatpush1.bf16.msra.mxu0 %v2081
    %2163 = vmatprep.subr.bf16.mxu0 0
    %2164 = vmatpush1.bf16.msra.mxu0 0
    %2165 = vmatprep.subr.bf16.mxu0 0
    %2166 = vmatpush1.bf16.msra.mxu0 0
    %2167 = vmatprep.subr.bf16.mxu0 0
    %2168 = vmatpush1.bf16.msra.mxu0 0
    %2169 = vmatprep.subr.bf16.mxu0 0
    %2170 = vmatpush1.bf16.msra.mxu0 0
    %2171 = vmatprep.subr.bf16.mxu0 0
    %2172 = vmatpush1.bf16.msra.mxu0 0
    %2173 = vmatprep.subr.bf16.mxu0 0
    %2174 = vmatpush1.bf16.msra.mxu0 0
    %2175 = vmatprep.subr.bf16.mxu0 0
    %2176 = vmatpush1.bf16.msra.mxu0 0
    %2177 = vmatprep.subr.bf16.mxu0 0
    %2178 = vmatpush1.bf16.msra.mxu0 0
    %2179 = vmatprep.mubr.bf16.mxu0 0
    %2180 = vmatmul.mubr.bf16.gmra.mrb[0].mxu0 %v1928
    %v2181 = vpop.f32.mrb[0].mxu0
    %v2182 = vadd.f32 %v1974, %v2181
    %v2183 = vpop.f32.mrb[0].mxu0
    %v2184 = vpop.f32.mrb[0].mxu0
    %v2185 = vpop.f32.mrb[0].mxu0
    %2186 = vdwg.mxu0
    %v2187 = vlaneseq
    %v2188 = vshrl.u32 %v2187, 7
    %vm2189 = vcmp.eq.s32.totalorder %v2188, %v808
    %v2190 = vsel %vm2189, 1, 0
    %v2191 = vcvt.s32.f32 %v2190
    %v2192 = vsel %vm896, %v886, 0
    %v2194 = vsel %vm896, %v893, 0
    %2196 = vmatprep.subr.mxu0 0.0
    %2197 = vmatpush1.msra.mxu0 %v2191
    %2198 = vmatprep.subr.mxu0 0.0
    %2199 = vmatpush1.msra.mxu0 0.0
    %2200 = vmatprep.subr.mxu0 0.0
    %2201 = vmatpush1.msra.mxu0 0.0
    %2202 = vmatprep.subr.mxu0 0.0
    %2203 = vmatpush1.msra.mxu0 0.0
    %2204 = vmatprep.subr.mxu0 0.0
    %2205 = vmatpush1.msra.mxu0 0.0
    %2206 = vmatprep.subr.mxu0 0.0
    %2207 = vmatpush1.msra.mxu0 0.0
    %2208 = vmatprep.subr.mxu0 0.0
    %2209 = vmatpush1.msra.mxu0 0.0
    %2210 = vmatprep.subr.mxu0 0.0
    %2211 = vmatpush1.msra.mxu0 0.0
    %2212 = vmatprep.subr.mxu0 0.0
    %2213 = vmatpush1.msra.mxu0 0.0
    %2214 = vmatprep.subr.mxu0 0.0
    %2215 = vmatpush1.msra.mxu0 0.0
    %2216 = vmatprep.subr.mxu0 0.0
    %2217 = vmatpush1.msra.mxu0 0.0
    %2218 = vmatprep.subr.mxu0 0.0
    %2219 = vmatpush1.msra.mxu0 0.0
    %2220 = vmatprep.subr.mxu0 0.0
    %2221 = vmatpush1.msra.mxu0 0.0
    %2222 = vmatprep.subr.mxu0 0.0
    %2223 = vmatpush1.msra.mxu0 0.0
    %2224 = vmatprep.subr.mxu0 0.0
    %2225 = vmatpush1.msra.mxu0 0.0
    %2226 = vmatprep.subr.mxu0 0.0
    %2227 = vmatpush1.msra.mxu0 0.0
    %2228 = vmatprep.subr.mxu0 0.0
    %2229 = vmatpush1.msra.mxu0 0.0
    %2230 = vmatprep.subr.mxu0 0.0
    %2231 = vmatpush1.msra.mxu0 0.0
    %2232 = vmatprep.subr.mxu0 0.0
    %2233 = vmatpush1.msra.mxu0 0.0
    %2234 = vmatprep.subr.mxu0 0.0
    %2235 = vmatpush1.msra.mxu0 0.0
    %2236 = vmatprep.subr.mxu0 0.0
    %2237 = vmatpush1.msra.mxu0 0.0
    %2238 = vmatprep.subr.mxu0 0.0
    %2239 = vmatpush1.msra.mxu0 0.0
    %2240 = vmatprep.subr.mxu0 0.0
    %2241 = vmatpush1.msra.mxu0 0.0
    %2242 = vmatprep.subr.mxu0 0.0
    %2243 = vmatpush1.msra.mxu0 0.0
    %2244 = vmatprep.subr.mxu0 0.0
    %2245 = vmatpush1.msra.mxu0 0.0
    %2246 = vmatprep.subr.mxu0 0.0
    %2247 = vmatpush1.msra.mxu0 0.0
    %2248 = vmatprep.subr.mxu0 0.0
    %2249 = vmatpush1.msra.mxu0 0.0
    %2250 = vmatprep.subr.mxu0 0.0
    %2251 = vmatpush1.msra.mxu0 0.0
    %2252 = vmatprep.subr.mxu0 0.0
    %2253 = vmatpush1.msra.mxu0 0.0
    %2254 = vmatprep.subr.mxu0 0.0
    %2255 = vmatpush1.msra.mxu0 0.0
    %2256 = vmatprep.subr.mxu0 0.0
    %2257 = vmatpush1.msra.mxu0 0.0
    %2258 = vmatprep.subr.mxu0 0.0
    %2259 = vmatpush1.msra.mxu0 0.0
    %2260 = vmatprep.mubr.f32.mxu0 0.0
    %2261 = vmatmul.mubr.f32.gmra.mrb[0].mxu0 %v2192
    %v2262 = vpop.f32.mrb[0].mxu0
    %v2263 = vadd.f32 0.0, %v2262
    %v2264 = vpop.f32.mrb[0].mxu0
    %2265 = vmatprep.mubr.f32.mxu0 0.0
    %2266 = vmatmul.mubr.f32.gmra.mrb[0].mxu0 %v2194
    %v2267 = vpop.f32.mrb[0].mxu0
    %v2268 = vadd.f32 0.0, %v2267
    %v2269 = vpop.f32.mrb[0].mxu0
    %2270 = vdwg.mxu0
    %2271 = vxpose.xlu0.b32.start [1/16] %v2263, 128
    %2272 = vxpose.xlu0.b32.cont [2/16] %v2268, 128
    %2273 = vxpose.xlu0.b32.cont [3/16] 0.0, 128
    %2274 = vxpose.xlu0.b32.cont [4/16] 0.0, 128
    %2275 = vxpose.xlu0.b32.cont [5/16] 0.0, 128
    %2276 = vxpose.xlu0.b32.cont [6/16] 0.0, 128
    %2277 = vxpose.xlu0.b32.cont [7/16] 0.0, 128
    %2278 = vxpose.xlu0.b32.cont [8/16] 0.0, 128
    %2279 = vxpose.xlu0.b32.cont [9/16] 0.0, 128
    %2280 = vxpose.xlu0.b32.cont [10/16] 0.0, 128
    %2281 = vxpose.xlu0.b32.cont [11/16] 0.0, 128
    %2282 = vxpose.xlu0.b32.cont [12/16] 0.0, 128
    %2283 = vxpose.xlu0.b32.cont [13/16] 0.0, 128
    %2284 = vxpose.xlu0.b32.cont [14/16] 0.0, 128
    %2285 = vxpose.xlu0.b32.cont [15/16] 0.0, 128
    %2286 = vxpose.xlu0.b32.end [16/16] 0.0, 128
    %v2287 = vpop.trf.xlu0
    %v2288 = vpop.trf.xlu0
    %v2289 = vpop.trf.xlu0
    %v2290 = vpop.trf.xlu0
    %v2291 = vpop.trf.xlu0
    %v2292 = vpop.trf.xlu0
    %v2293 = vpop.trf.xlu0
    %v2294 = vpop.trf.xlu0
    %v2295 = vpop.trf.xlu0
    %v2296 = vpop.trf.xlu0
    %v2297 = vpop.trf.xlu0
    %v2298 = vpop.trf.xlu0
    %v2299 = vpop.trf.xlu0
    %v2300 = vpop.trf.xlu0
    %v2301 = vpop.trf.xlu0
    %v2302 = vpop.trf.xlu0
    %2303 = vst [vmem:[#allocation7] sm:$0xff] %v2287
    %2304 = vst [vmem:[%s13] sm:$0xff] %v2141
    %2305 = vst [vmem:[%s13 + $0x8] sm:$0xff] %v2143
    %2306 = vst [vmem:[%s13 + $0x10] sm:$0xff] %v2182
    %2307 = vst [vmem:[%s14] sm:$0xff] %v1927
    %2308 = vst [vmem:[%s15] sm:$0xff] %v1925
    // Predicated region
    $region58: #{ptr_decoder_forward.1} parent=1 // pred_check
      _
    $region59: #{ptr_decoder_forward.1} parent=1 // pred_check_branch
      %2310 = sbr.rel (0) target = $region61
    $region60: #{ptr_decoder_forward.1} parent=1 // pred_region
      %s2312 = ssub.s32 128, 128
      %2313 = vsyncadd [#allocation4], %s2312
      %s2315 = sshll.u32 [#allocation7], 4
      %s2316 = int_to_ptr.vmem [resolvable:$true] %s2315
      %2318 = dma.vmem_to_hbm [thread:$0]  %s2316, 128, %s12, [#allocation4]
    $region61: #{ptr_decoder_forward.1} parent=1 // pred_fallthru
      _
    // Predicated region
    $region62: #{ptr_decoder_forward.1} parent=1 // pred_check
      _
    $region63: #{ptr_decoder_forward.1} parent=1 // pred_check_branch
      %2320 = sbr.rel (0) target = $region65
    $region64: #{ptr_decoder_forward.1} parent=1 // pred_region
      _
    $region65: #{ptr_decoder_forward.1} parent=1 // pred_fallthru
      _
    // Predicated region
    $region66: #{ptr_decoder_forward.1} parent=1 // pred_check
      _
    $region67: #{ptr_decoder_forward.1} parent=1 // pred_check_branch
      %2322 = sbr.rel (0) target = $region69
    $region68: #{ptr_decoder_forward.1} parent=1 // pred_region
      _
    $region69: #{ptr_decoder_forward.1} parent=1 // pred_fallthru
      _
    // Predicated region
    $region70: #{ptr_decoder_forward.1} parent=1 // pred_check
      _
    $region71: #{ptr_decoder_forward.1} parent=1 // pred_check_branch
      %2324 = sbr.rel (0) target = $region73
    $region72: #{ptr_decoder_forward.1} parent=1 // pred_region
      _
    $region73: #{ptr_decoder_forward.1} parent=1 // pred_fallthru
      _
    // Predicated region
    $region74: #{ptr_decoder_forward.1} parent=1 // pred_check
      _
    $region75: #{ptr_decoder_forward.1} parent=1 // pred_check_branch
      %2326 = sbr.rel (0) target = $region77
    $region76: #{ptr_decoder_forward.1} parent=1 // pred_region
      %2327 = dma.done [#allocation4], 128
    $region77: #{ptr_decoder_forward.1} parent=1 // pred_fallthru
      _
    // Predicated region
    $region78: #{ptr_decoder_forward.1} parent=1 // pred_check
      _
    $region79: #{ptr_decoder_forward.1} parent=1 // pred_check_branch
      %2329 = sbr.rel (0) target = $region81
    $region80: #{ptr_decoder_forward.1} parent=1 // pred_region
      _
    $region81: #{ptr_decoder_forward.1} parent=1 // pred_fallthru
      _
    // Predicated region
    $region82: #{ptr_decoder_forward.1} parent=1 // pred_check
      _
    $region83: #{ptr_decoder_forward.1} parent=1 // pred_check_branch
      %2331 = sbr.rel (0) target = $region85
    $region84: #{ptr_decoder_forward.1} parent=1 // pred_region
      _
    $region85: #{ptr_decoder_forward.1} parent=1 // pred_fallthru
      _
    // Predicated region
    $region86: #{ptr_decoder_forward.1} parent=1 // pred_check
      _
    $region87: #{ptr_decoder_forward.1} parent=1 // pred_check_branch
      %2333 = sbr.rel (0) target = $region89
    $region88: #{ptr_decoder_forward.1} parent=1 // pred_region
      _
    $region89: #{ptr_decoder_forward.1} parent=1 // pred_fallthru
      _
    %2334 = vsyncpa [#allocation3], 1
    %2335 = vsyncpa [#allocation6], 1
    %2336 = vsyncpa [#allocation4], 1

</llo_original>
